<compile_context>
chip_gen: v6e
topology: v6e:2x2x1
jax: 0.10.0
libtpu: 0.0.40
codegen_flags: <defaults>
</compile_context>

<pallas_src>
import functools

import jax
import jax.numpy as jnp
from jax.experimental import pallas as pl
from jax.experimental.pallas import tpu as pltpu


def _self_attention_kernel(q_ref, k_ref, v_ref, bias_ref,
                           wq_ref, wk_ref, wv_ref, wo_ref, bo_ref,
                           out_ref, attn_ref,
                           qp_s, kp_s, vp_s, ctx_s,
                           *, num_heads, head_dim):
    """One grid step = (batch element n, query tile qt).

    q_ref:    (1, TQ, E)  f32    query tile
    k_ref:    (1, K,  E)  f32    full keys for this batch element
    v_ref:    (1, K,  E)  f32    full values
    bias_ref: (1, 1, TQ, K) bf16 additive mask bias (0 or -1e20)
    wq/wk/wv: (E, E) bf16        block-diagonal projection weights
                                 (1/sqrt(E) already folded into wq)
    wo_ref:   (E, E) bf16        fc_out weight, already transposed (in, out)
    bo_ref:   (1, E) f32         fc_out bias
    out_ref:  (1, TQ, E) f32
    attn_ref: (1, H, TQ, K) f32
    scratch:  qp_s (TQ,E) / kp_s (K,E) / vp_s (K,E) / ctx_s (TQ,E), all bf16
    """
    H, D = num_heads, head_dim

    # K/V projections: only for the first query tile of each batch element.
    # The scratch persists across the (sequential, "arbitrary") q-tile axis,
    # so later tiles of the same batch element reuse it.  Full-width
    # (K, E) @ (E, E) bf16 matmuls with f32 accumulation.
    @pl.when(pl.program_id(1) == 0)
    def _project_kv():
        k = k_ref[0].astype(jnp.bfloat16)
        v = v_ref[0].astype(jnp.bfloat16)
        kp_s[...] = jnp.dot(k, wk_ref[...],
                            preferred_element_type=jnp.float32).astype(jnp.bfloat16)
        vp_s[...] = jnp.dot(v, wv_ref[...],
                            preferred_element_type=jnp.float32).astype(jnp.bfloat16)

    # Q projection for this tile (scale 1/sqrt(E) folded into wq host-side).
    q = q_ref[0].astype(jnp.bfloat16)
    qp_s[...] = jnp.dot(q, wq_ref[...],
                        preferred_element_type=jnp.float32).astype(jnp.bfloat16)

    bias = bias_ref[0, 0].astype(jnp.float32)            # (TQ, K) additive mask

    # Per-head attention (static unroll; H is small and slices are static, so
    # the LLO scheduler sees the whole chain).  The D-deep contraction is
    # inherent to multi-head attention; everything else is full-width.
    for h in range(H):
        lo = h * D
        q_h = qp_s[:, lo:lo + D]                         # (TQ, D) bf16
        k_h = kp_s[:, lo:lo + D]                         # (K,  D) bf16
        v_h = vp_s[:, lo:lo + D]                         # (K,  D) bf16

        # Scores already carry the 1/sqrt(E) scale; mask applied as an add.
        s_h = jnp.einsum('qd,kd->qk', q_h, k_h,
                         preferred_element_type=jnp.float32)
        s_h = s_h + bias                                 # (TQ, K) f32

        # Softmax over keys, f32; normalization via EUP approx reciprocal
        # (EUP slot is free relative to the VALU/MXU work here).
        m_h = jnp.max(s_h, axis=-1, keepdims=True)
        p_h = jnp.exp(s_h - m_h)
        l_h = jnp.sum(p_h, axis=-1, keepdims=True)
        a_h = p_h * pl.reciprocal(l_h, approx=True)

        attn_ref[0, h] = a_h                             # f32 output, lane-dense K

        # PV: (TQ, K) @ (K, D), full-seq contraction.  Assemble the context
        # into the lane slot of head h so fc_out is one full-width matmul.
        ctx_s[:, lo:lo + D] = jnp.dot(
            a_h.astype(jnp.bfloat16), v_h,
            preferred_element_type=jnp.float32).astype(jnp.bfloat16)

    # fc_out: one (TQ, E) @ (E, E) bf16 matmul, f32 accumulation, + bias.
    out = jnp.dot(ctx_s[...], wo_ref[...], preferred_element_type=jnp.float32)
    out_ref[0] = out + bo_ref[...]


def self_attention(values, keys, query, mask, params, *, embed_size, num_heads,
                   max_q_tile=128):
    """Pallas implementation of SelfAttention.forward. Returns (out, attention)."""
    wv, wk, wq, wo, bo = params
    N, v_len, E = values.shape
    k_len = keys.shape[1]
    q_len = query.shape[1]
    assert E == embed_size
    assert v_len == k_len, "values/keys sequence lengths must match"
    H = num_heads
    D = E // H
    assert H * D == E, "embed_size must be divisible by num_heads"

    # --- host-side parameter prep (tiny, one-time) -------------------------
    scale = jnp.float32(1.0 / float(E) ** 0.5)
    eye = jnp.eye(H, dtype=jnp.float32)
    # Block-diagonal (E, E) weights: x(L,E) @ BD  ==  per-head x_h @ W^T.
    wq_bd = (jnp.kron(eye, wq.T.astype(jnp.float32)) * scale).astype(jnp.bfloat16)
    wk_bd = jnp.kron(eye, wk.T.astype(jnp.float32)).astype(jnp.bfloat16)
    wv_bd = jnp.kron(eye, wv.T.astype(jnp.float32)).astype(jnp.bfloat16)
    wo_t = wo.T.astype(jnp.bfloat16)                     # (E_in, E_out)
    bo2 = bo.reshape(1, E).astype(jnp.float32)

    # Additive mask bias (bf16): 0 where attended, -1e20 where masked.
    # (PyTorch masks before the /sqrt(E); -1e20 vs -1e20/sqrt(E) are both
    #  "effectively -inf" for the softmax, so results match.)
    if mask is None:
        bias = jnp.zeros((N, 1, q_len, k_len), jnp.bfloat16)
    else:
        bias = jnp.where(mask == 0, jnp.float32(-1e20), jnp.float32(0.0))
        bias = jnp.broadcast_to(bias, (N, 1, q_len, k_len)).astype(jnp.bfloat16)

    # --- tiling -------------------------------------------------------------
    tq = q_len if q_len <= max_q_tile else max_q_tile
    grid_q = pl.cdiv(q_len, tq)

    kernel = functools.partial(_self_attention_kernel,
                               num_heads=H, head_dim=D)

    out, attn = pl.pallas_call(
        kernel,
        out_shape=(
            jax.ShapeDtypeStruct((N, q_len, E), jnp.float32),
            jax.ShapeDtypeStruct((N, H, q_len, k_len), jnp.float32),
        ),
        grid_spec=pltpu.PrefetchScalarGridSpec(
            num_scalar_prefetch=0,
            grid=(N, grid_q),
            in_specs=[
                pl.BlockSpec((1, tq, E), lambda n, t: (n, t, 0)),        # query
                pl.BlockSpec((1, k_len, E), lambda n, t: (n, 0, 0)),     # keys
                pl.BlockSpec((1, k_len, E), lambda n, t: (n, 0, 0)),     # values
                pl.BlockSpec((1, 1, tq, k_len), lambda n, t: (n, 0, t, 0)),  # mask bias
                pl.BlockSpec((E, E), lambda n, t: (0, 0)),               # Wq (blockdiag, scaled)
                pl.BlockSpec((E, E), lambda n, t: (0, 0)),               # Wk (blockdiag)
                pl.BlockSpec((E, E), lambda n, t: (0, 0)),               # Wv (blockdiag)
                pl.BlockSpec((E, E), lambda n, t: (0, 0)),               # Wo^T
                pl.BlockSpec((1, E), lambda n, t: (0, 0)),               # b_out
            ],
            out_specs=[
                pl.BlockSpec((1, tq, E), lambda n, t: (n, t, 0)),
                pl.BlockSpec((1, H, tq, k_len), lambda n, t: (n, 0, t, 0)),
            ],
            scratch_shapes=[
                pltpu.VMEM((tq, E), jnp.bfloat16),      # projected Q tile
                pltpu.VMEM((k_len, E), jnp.bfloat16),   # projected K (reused across q tiles)
                pltpu.VMEM((k_len, E), jnp.bfloat16),   # projected V (reused across q tiles)
                pltpu.VMEM((tq, E), jnp.bfloat16),      # assembled context (TQ, H*D)
            ],
        ),
        compiler_params=pltpu.CompilerParams(
            # batch axis shards across TensorCores; q-tile axis must stay
            # sequential ("arbitrary") so the K/V projection scratch computed
            # at q-tile 0 is valid for the later tiles of the same batch elem.
            dimension_semantics=("parallel", "arbitrary"),
            # Above the 16 MiB v5e default, equal to the v6e default and within
            # v7x's 64 MiB; q tiling keeps per-step blocks well under this.
            vmem_limit_bytes=32 * 1024 * 1024,
        ),
    )(query, keys, values, bias, wq_bd, wk_bd, wv_bd, wo_t, bo2)
    return out, attn


def ref_self_attention(values, keys, query, mask, params, *, num_heads):
    """Pure-JAX f32 reference, mirrors the PyTorch forward exactly."""
    wv, wk, wq, wo, bo = params
    N, _, E = values.shape
    H = num_heads
    D = E // H
    v = values.reshape(N, values.shape[1], H, D) @ wv.T
    k = keys.reshape(N, keys.shape[1], H, D) @ wk.T
    q = query.reshape(N, query.shape[1], H, D) @ wq.T
    att = jnp.einsum('nqhd,nkhd->nhqk', q, k)
    if mask is not None:
        att = jnp.where(mask == 0, jnp.float32(-1e20), att)
    att = jax.nn.softmax(att / float(E) ** 0.5, axis=3)
    out = jnp.einsum('nhql,nlhd->nqhd', att, v).reshape(N, query.shape[1], H * D)
    out = out @ wo.T + bo
    return out, att


if __name__ == "__main__":
    N, S, E, H = 2, 8, 32, 4
    D = E // H

    key = jax.random.PRNGKey(0)
    kv, kk, kq, kwv, kwk, kwq, kwo, kbo = jax.random.split(key, 8)

    values = jax.random.normal(kv, (N, S, E), jnp.float32)
    keys_in = jax.random.normal(kk, (N, S, E), jnp.float32)
    query = jax.random.normal(kq, (N, S, E), jnp.float32)

    # Causal mask, broadcast over heads: (N, 1, Q, K)
    mask = jnp.broadcast_to(jnp.tril(jnp.ones((S, S), jnp.float32))[None, None],
                            (N, 1, S, S))

    # Deterministic parameter init (torch Linear-style uniform ranges).
    bd = 1.0 / D ** 0.5
    be = 1.0 / E ** 0.5
    wv = jax.random.uniform(kwv, (D, D), jnp.float32, -bd, bd)
    wk = jax.random.uniform(kwk, (D, D), jnp.float32, -bd, bd)
    wq = jax.random.uniform(kwq, (D, D), jnp.float32, -bd, bd)
    wo = jax.random.uniform(kwo, (E, E), jnp.float32, -be, be)
    bo = jax.random.uniform(kbo, (E,), jnp.float32, -be, be)
    params = (wv, wk, wq, wo, bo)

    out, attn = self_attention(values, keys_in, query, mask, params,
                               embed_size=E, num_heads=H)
    out = jax.block_until_ready(out)
    attn = jax.block_until_ready(attn)

    out_ref, attn_ref = ref_self_attention(values, keys_in, query, mask, params,
                                           num_heads=H)

    assert out.shape == (N, S, E) and attn.shape == (N, H, S, S)
    # Matmul operands are bf16 inside the kernel (f32 accumulation), so compare
    # against the f32 reference with a bf16-appropriate tolerance.
    assert jnp.allclose(out, out_ref, rtol=2e-2, atol=2e-2), "out mismatch"
    assert jnp.allclose(attn, attn_ref, rtol=2e-2, atol=2e-2), "attn mismatch"
    print("KERNEL_OK")
</pallas_src>

<mosaic_0001>
module attributes {stable_mosaic.version = 11 : i64} {
  func.func @_self_attention_kernel(%arg0: i32, %arg1: i32, %arg2: memref<1x8x32xf32, #tpu.memory_space<vmem>>, %arg3: memref<1x8x32xf32, #tpu.memory_space<vmem>>, %arg4: memref<1x8x32xf32, #tpu.memory_space<vmem>>, %arg5: memref<1x1x8x8xbf16, #tpu.memory_space<vmem>>, %arg6: memref<32x32xbf16, #tpu.memory_space<vmem>>, %arg7: memref<32x32xbf16, #tpu.memory_space<vmem>>, %arg8: memref<32x32xbf16, #tpu.memory_space<vmem>>, %arg9: memref<32x32xbf16, #tpu.memory_space<vmem>>, %arg10: memref<1x32xf32, #tpu.memory_space<vmem>>, %arg11: memref<1x8x32xf32, #tpu.memory_space<vmem>>, %arg12: memref<1x4x8x8xf32, #tpu.memory_space<vmem>>, %arg13: memref<8x32xbf16, #tpu.memory_space<vmem>>, %arg14: memref<8x32xbf16, #tpu.memory_space<vmem>>, %arg15: memref<8x32xbf16, #tpu.memory_space<vmem>>, %arg16: memref<8x32xbf16, #tpu.memory_space<vmem>>) attributes {dimension_semantics = [#tpu.dimension_semantics<parallel>, #tpu.dimension_semantics<arbitrary>], iteration_bounds = array<i64: 2, 1>, scalar_prefetch = 0 : i64, scratch_operands = 4 : i64, tpu.core_type = #tpu.core_type<tc>, window_params = [{transform_indices = @transform_0, window_bounds = array<i64: 1, 8, 32>}, {transform_indices = @transform_1, window_bounds = array<i64: 1, 8, 32>}, {transform_indices = @transform_2, window_bounds = array<i64: 1, 8, 32>}, {transform_indices = @transform_3, window_bounds = array<i64: 1, 1, 8, 8>}, {pipeline_mode = #tpu.pipeline_mode<synchronous>, transform_indices = @transform_4, window_bounds = array<i64: 32, 32>}, {pipeline_mode = #tpu.pipeline_mode<synchronous>, transform_indices = @transform_5, window_bounds = array<i64: 32, 32>}, {pipeline_mode = #tpu.pipeline_mode<synchronous>, transform_indices = @transform_6, window_bounds = array<i64: 32, 32>}, {pipeline_mode = #tpu.pipeline_mode<synchronous>, transform_indices = @transform_7, window_bounds = array<i64: 32, 32>}, {pipeline_mode = #tpu.pipeline_mode<synchronous>, transform_indices = @transform_8, window_bounds = array<i64: 1, 32>}, {transform_indices = @transform_9, window_bounds = array<i64: 1, 8, 32>}, {transform_indices = @transform_10, window_bounds = array<i64: 1, 4, 8, 8>}]} {
    %c0_i32 = arith.constant 0 : i32
    %0 = arith.cmpi eq, %arg1, %c0_i32 : i32
    %1 = arith.extui %0 : i1 to i32
    %c0_i32_0 = arith.constant 0 : i32
    %2 = arith.cmpi ne, %1, %c0_i32_0 : i32
    scf.if %2 {
      %c0_79 = arith.constant 0 : index
      %c0_80 = arith.constant 0 : index
      %c0_81 = arith.constant 0 : index
      %110 = vector.load %arg3[%c0_79, %c0_80, %c0_81] : memref<1x8x32xf32, #tpu.memory_space<vmem>>, vector<1x8x32xf32>
      %111 = vector.shape_cast %110 : vector<1x8x32xf32> to vector<8x32xf32>
      %112 = arith.truncf %111 : vector<8x32xf32> to vector<8x32xbf16>
      %c0_82 = arith.constant 0 : index
      %c0_83 = arith.constant 0 : index
      %c0_84 = arith.constant 0 : index
      %113 = vector.load %arg4[%c0_82, %c0_83, %c0_84] : memref<1x8x32xf32, #tpu.memory_space<vmem>>, vector<1x8x32xf32>
      %114 = vector.shape_cast %113 : vector<1x8x32xf32> to vector<8x32xf32>
      %115 = arith.truncf %114 : vector<8x32xf32> to vector<8x32xbf16>
      %c0_85 = arith.constant 0 : index
      %c0_86 = arith.constant 0 : index
      %116 = vector.load %arg7[%c0_85, %c0_86] : memref<32x32xbf16, #tpu.memory_space<vmem>>, vector<32x32xbf16>
      %cst_87 = arith.constant dense<0.000000e+00> : vector<8x32xf32>
      %117 = tpu.matmul %112, %116, %cst_87 {dimension_numbers = #tpu.dot_dimension_numbers<[1], [0], [0], [1], [0, 0, 1, 1], [], []>} : vector<8x32xbf16>, vector<32x32xbf16>, vector<8x32xf32> -> vector<8x32xf32>
      %118 = arith.truncf %117 : vector<8x32xf32> to vector<8x32xbf16>
      %c0_88 = arith.constant 0 : index
      %c0_89 = arith.constant 0 : index
      %119 = vector.load %arg14[%c0_88, %c0_89] : memref<8x32xbf16, #tpu.memory_space<vmem>>, vector<8x32xbf16>
      tpu.vector_store %arg14[%c0_88, %c0_89], %118 {strides = array<i32>} : memref<8x32xbf16, #tpu.memory_space<vmem>>, vector<8x32xbf16>,
      %c0_90 = arith.constant 0 : index
      %c0_91 = arith.constant 0 : index
      %120 = vector.load %arg8[%c0_90, %c0_91] : memref<32x32xbf16, #tpu.memory_space<vmem>>, vector<32x32xbf16>
      %cst_92 = arith.constant dense<0.000000e+00> : vector<8x32xf32>
      %121 = tpu.matmul %115, %120, %cst_92 {dimension_numbers = #tpu.dot_dimension_numbers<[1], [0], [0], [1], [0, 0, 1, 1], [], []>} : vector<8x32xbf16>, vector<32x32xbf16>, vector<8x32xf32> -> vector<8x32xf32>
      %122 = arith.truncf %121 : vector<8x32xf32> to vector<8x32xbf16>
      %c0_93 = arith.constant 0 : index
      %c0_94 = arith.constant 0 : index
      %123 = vector.load %arg15[%c0_93, %c0_94] : memref<8x32xbf16, #tpu.memory_space<vmem>>, vector<8x32xbf16>
      tpu.vector_store %arg15[%c0_93, %c0_94], %122 {strides = array<i32>} : memref<8x32xbf16, #tpu.memory_space<vmem>>, vector<8x32xbf16>,
    } else {
    }
    %c0 = arith.constant 0 : index
    %c0_1 = arith.constant 0 : index
    %c0_2 = arith.constant 0 : index
    %3 = vector.load %arg2[%c0, %c0_1, %c0_2] : memref<1x8x32xf32, #tpu.memory_space<vmem>>, vector<1x8x32xf32>
    %4 = vector.shape_cast %3 : vector<1x8x32xf32> to vector<8x32xf32>
    %5 = arith.truncf %4 : vector<8x32xf32> to vector<8x32xbf16>
    %c0_3 = arith.constant 0 : index
    %c0_4 = arith.constant 0 : index
    %6 = vector.load %arg6[%c0_3, %c0_4] : memref<32x32xbf16, #tpu.memory_space<vmem>>, vector<32x32xbf16>
    %cst = arith.constant dense<0.000000e+00> : vector<8x32xf32>
    %7 = tpu.matmul %5, %6, %cst {dimension_numbers = #tpu.dot_dimension_numbers<[1], [0], [0], [1], [0, 0, 1, 1], [], []>} : vector<8x32xbf16>, vector<32x32xbf16>, vector<8x32xf32> -> vector<8x32xf32>
    %8 = arith.truncf %7 : vector<8x32xf32> to vector<8x32xbf16>
    %c0_5 = arith.constant 0 : index
    %c0_6 = arith.constant 0 : index
    %9 = vector.load %arg13[%c0_5, %c0_6] : memref<8x32xbf16, #tpu.memory_space<vmem>>, vector<8x32xbf16>
    tpu.vector_store %arg13[%c0_5, %c0_6], %8 {strides = array<i32>} : memref<8x32xbf16, #tpu.memory_space<vmem>>, vector<8x32xbf16>,
    %c0_7 = arith.constant 0 : index
    %c0_8 = arith.constant 0 : index
    %c0_9 = arith.constant 0 : index
    %c0_10 = arith.constant 0 : index
    %10 = vector.load %arg5[%c0_7, %c0_8, %c0_9, %c0_10] : memref<1x1x8x8xbf16, #tpu.memory_space<vmem>>, vector<1x1x8x8xbf16>
    %11 = vector.shape_cast %10 : vector<1x1x8x8xbf16> to vector<8x8xbf16>
    %12 = arith.extf %11 : vector<8x8xbf16> to vector<8x8xf32>
    %c0_11 = arith.constant 0 : index
    %c0_12 = arith.constant 0 : index
    %13 = vector.load %arg13[%c0_11, %c0_12] : memref<8x32xbf16, #tpu.memory_space<vmem>>, vector<8x8xbf16>
    %c0_13 = arith.constant 0 : index
    %c0_14 = arith.constant 0 : index
    %14 = vector.load %arg14[%c0_13, %c0_14] : memref<8x32xbf16, #tpu.memory_space<vmem>>, vector<8x8xbf16>
    %c0_15 = arith.constant 0 : index
    %c0_16 = arith.constant 0 : index
    %15 = vector.load %arg15[%c0_15, %c0_16] : memref<8x32xbf16, #tpu.memory_space<vmem>>, vector<8x8xbf16>
    "tpu.trace_start"() <{level = 10 : i32, message = "qd,kd->qk"}> : () -> ()
    %cst_17 = arith.constant dense<0.000000e+00> : vector<8x8xf32>
    %16 = tpu.matmul %13, %14, %cst_17 {dimension_numbers = #tpu.dot_dimension_numbers<[1], [1], [0], [0], [0, 0, 1, 0], [], []>} : vector<8x8xbf16>, vector<8x8xbf16>, vector<8x8xf32> -> vector<8x8xf32>
    "tpu.trace_stop"() : () -> ()
    %17 = arith.addf %16, %12 : vector<8x8xf32>
    %cst_18 = arith.constant dense<0xFF800000> : vector<8xf32>
    %18 = vector.multi_reduction <maximumf>, %17, %cst_18 [1] : vector<8x8xf32> to vector<8xf32>
    %19 = vector.shape_cast %18 : vector<8xf32> to vector<8x1xf32>
    %20 = vector.broadcast %19 : vector<8x1xf32> to vector<8x8xf32>
    %21 = arith.subf %17, %20 : vector<8x8xf32>
    %22 = math.exp %21 : vector<8x8xf32>
    %cst_19 = arith.constant dense<0.000000e+00> : vector<8xf32>
    %23 = vector.multi_reduction <add>, %22, %cst_19 [1] : vector<8x8xf32> to vector<8xf32>
    %24 = vector.shape_cast %23 : vector<8xf32> to vector<8x1xf32>
    %25 = tpu.reciprocal %24 {approx = true} : vector<8x1xf32> -> vector<8x1xf32>
    %26 = vector.broadcast %25 : vector<8x1xf32> to vector<8x8xf32>
    %27 = arith.mulf %22, %26 : vector<8x8xf32>
    %c0_20 = arith.constant 0 : index
    %c0_21 = arith.constant 0 : index
    %c0_22 = arith.constant 0 : index
    %c0_23 = arith.constant 0 : index
    %28 = vector.load %arg12[%c0_20, %c0_21, %c0_22, %c0_23] : memref<1x4x8x8xf32, #tpu.memory_space<vmem>>, vector<1x1x8x8xf32>
    %29 = vector.shape_cast %28 : vector<1x1x8x8xf32> to vector<8x8xf32>
    %30 = vector.shape_cast %27 : vector<8x8xf32> to vector<1x1x8x8xf32>
    tpu.vector_store %arg12[%c0_20, %c0_21, %c0_22, %c0_23], %30 {strides = array<i32>} : memref<1x4x8x8xf32, #tpu.memory_space<vmem>>, vector<1x1x8x8xf32>,
    %31 = arith.truncf %27 : vector<8x8xf32> to vector<8x8xbf16>
    %cst_24 = arith.constant dense<0.000000e+00> : vector<8x8xf32>
    %32 = tpu.matmul %31, %15, %cst_24 {dimension_numbers = #tpu.dot_dimension_numbers<[1], [0], [0], [1], [0, 0, 1, 1], [], []>} : vector<8x8xbf16>, vector<8x8xbf16>, vector<8x8xf32> -> vector<8x8xf32>
    %33 = arith.truncf %32 : vector<8x8xf32> to vector<8x8xbf16>
    %c0_25 = arith.constant 0 : index
    %c0_26 = arith.constant 0 : index
    %34 = vector.load %arg16[%c0_25, %c0_26] : memref<8x32xbf16, #tpu.memory_space<vmem>>, vector<8x8xbf16>
    tpu.vector_store %arg16[%c0_25, %c0_26], %33 {strides = array<i32>} : memref<8x32xbf16, #tpu.memory_space<vmem>>, vector<8x8xbf16>,
    %c0_27 = arith.constant 0 : index
    %c8 = arith.constant 8 : index
    %35 = vector.load %arg13[%c0_27, %c8] : memref<8x32xbf16, #tpu.memory_space<vmem>>, vector<8x8xbf16>
    %c0_28 = arith.constant 0 : index
    %c8_29 = arith.constant 8 : index
    %36 = vector.load %arg14[%c0_28, %c8_29] : memref<8x32xbf16, #tpu.memory_space<vmem>>, vector<8x8xbf16>
    %c0_30 = arith.constant 0 : index
    %c8_31 = arith.constant 8 : index
    %37 = vector.load %arg15[%c0_30, %c8_31] : memref<8x32xbf16, #tpu.memory_space<vmem>>, vector<8x8xbf16>
    "tpu.trace_start"() <{level = 10 : i32, message = "qd,kd->qk"}> : () -> ()
    %cst_32 = arith.constant dense<0.000000e+00> : vector<8x8xf32>
    %38 = tpu.matmul %35, %36, %cst_32 {dimension_numbers = #tpu.dot_dimension_numbers<[1], [1], [0], [0], [0, 0, 1, 0], [], []>} : vector<8x8xbf16>, vector<8x8xbf16>, vector<8x8xf32> -> vector<8x8xf32>
    "tpu.trace_stop"() : () -> ()
    %39 = arith.addf %38, %12 : vector<8x8xf32>
    %cst_33 = arith.constant dense<0xFF800000> : vector<8xf32>
    %40 = vector.multi_reduction <maximumf>, %39, %cst_33 [1] : vector<8x8xf32> to vector<8xf32>
    %41 = vector.shape_cast %40 : vector<8xf32> to vector<8x1xf32>
    %42 = vector.broadcast %41 : vector<8x1xf32> to vector<8x8xf32>
    %43 = arith.subf %39, %42 : vector<8x8xf32>
    %44 = math.exp %43 : vector<8x8xf32>
    %cst_34 = arith.constant dense<0.000000e+00> : vector<8xf32>
    %45 = vector.multi_reduction <add>, %44, %cst_34 [1] : vector<8x8xf32> to vector<8xf32>
    %46 = vector.shape_cast %45 : vector<8xf32> to vector<8x1xf32>
    %47 = tpu.reciprocal %46 {approx = true} : vector<8x1xf32> -> vector<8x1xf32>
    %48 = vector.broadcast %47 : vector<8x1xf32> to vector<8x8xf32>
    %49 = arith.mulf %44, %48 : vector<8x8xf32>
    %c0_35 = arith.constant 0 : index
    %c1 = arith.constant 1 : index
    %c0_36 = arith.constant 0 : index
    %c0_37 = arith.constant 0 : index
    %50 = vector.load %arg12[%c0_35, %c1, %c0_36, %c0_37] : memref<1x4x8x8xf32, #tpu.memory_space<vmem>>, vector<1x1x8x8xf32>
    %51 = vector.shape_cast %50 : vector<1x1x8x8xf32> to vector<8x8xf32>
    %52 = vector.shape_cast %49 : vector<8x8xf32> to vector<1x1x8x8xf32>
    tpu.vector_store %arg12[%c0_35, %c1, %c0_36, %c0_37], %52 {strides = array<i32>} : memref<1x4x8x8xf32, #tpu.memory_space<vmem>>, vector<1x1x8x8xf32>,
    %53 = arith.truncf %49 : vector<8x8xf32> to vector<8x8xbf16>
    %cst_38 = arith.constant dense<0.000000e+00> : vector<8x8xf32>
    %54 = tpu.matmul %53, %37, %cst_38 {dimension_numbers = #tpu.dot_dimension_numbers<[1], [0], [0], [1], [0, 0, 1, 1], [], []>} : vector<8x8xbf16>, vector<8x8xbf16>, vector<8x8xf32> -> vector<8x8xf32>
    %55 = arith.truncf %54 : vector<8x8xf32> to vector<8x8xbf16>
    %c0_39 = arith.constant 0 : index
    %c8_40 = arith.constant 8 : index
    %56 = vector.load %arg16[%c0_39, %c8_40] : memref<8x32xbf16, #tpu.memory_space<vmem>>, vector<8x8xbf16>
    tpu.vector_store %arg16[%c0_39, %c8_40], %55 {strides = array<i32>} : memref<8x32xbf16, #tpu.memory_space<vmem>>, vector<8x8xbf16>,
    %c0_41 = arith.constant 0 : index
    %c16 = arith.constant 16 : index
    %57 = vector.load %arg13[%c0_41, %c16] : memref<8x32xbf16, #tpu.memory_space<vmem>>, vector<8x8xbf16>
    %c0_42 = arith.constant 0 : index
    %c16_43 = arith.constant 16 : index
    %58 = vector.load %arg14[%c0_42, %c16_43] : memref<8x32xbf16, #tpu.memory_space<vmem>>, vector<8x8xbf16>
    %c0_44 = arith.constant 0 : index
    %c16_45 = arith.constant 16 : index
    %59 = vector.load %arg15[%c0_44, %c16_45] : memref<8x32xbf16, #tpu.memory_space<vmem>>, vector<8x8xbf16>
    "tpu.trace_start"() <{level = 10 : i32, message = "qd,kd->qk"}> : () -> ()
    %cst_46 = arith.constant dense<0.000000e+00> : vector<8x8xf32>
    %60 = tpu.matmul %57, %58, %cst_46 {dimension_numbers = #tpu.dot_dimension_numbers<[1], [1], [0], [0], [0, 0, 1, 0], [], []>} : vector<8x8xbf16>, vector<8x8xbf16>, vector<8x8xf32> -> vector<8x8xf32>
    "tpu.trace_stop"() : () -> ()
    %61 = arith.addf %60, %12 : vector<8x8xf32>
    %cst_47 = arith.constant dense<0xFF800000> : vector<8xf32>
    %62 = vector.multi_reduction <maximumf>, %61, %cst_47 [1] : vector<8x8xf32> to vector<8xf32>
    %63 = vector.shape_cast %62 : vector<8xf32> to vector<8x1xf32>
    %64 = vector.broadcast %63 : vector<8x1xf32> to vector<8x8xf32>
    %65 = arith.subf %61, %64 : vector<8x8xf32>
    %66 = math.exp %65 : vector<8x8xf32>
    %cst_48 = arith.constant dense<0.000000e+00> : vector<8xf32>
    %67 = vector.multi_reduction <add>, %66, %cst_48 [1] : vector<8x8xf32> to vector<8xf32>
    %68 = vector.shape_cast %67 : vector<8xf32> to vector<8x1xf32>
    %69 = tpu.reciprocal %68 {approx = true} : vector<8x1xf32> -> vector<8x1xf32>
    %70 = vector.broadcast %69 : vector<8x1xf32> to vector<8x8xf32>
    %71 = arith.mulf %66, %70 : vector<8x8xf32>
    %c0_49 = arith.constant 0 : index
    %c2 = arith.constant 2 : index
    %c0_50 = arith.constant 0 : index
    %c0_51 = arith.constant 0 : index
    %72 = vector.load %arg12[%c0_49, %c2, %c0_50, %c0_51] : memref<1x4x8x8xf32, #tpu.memory_space<vmem>>, vector<1x1x8x8xf32>
    %73 = vector.shape_cast %72 : vector<1x1x8x8xf32> to vector<8x8xf32>
    %74 = vector.shape_cast %71 : vector<8x8xf32> to vector<1x1x8x8xf32>
    tpu.vector_store %arg12[%c0_49, %c2, %c0_50, %c0_51], %74 {strides = array<i32>} : memref<1x4x8x8xf32, #tpu.memory_space<vmem>>, vector<1x1x8x8xf32>,
    %75 = arith.truncf %71 : vector<8x8xf32> to vector<8x8xbf16>
    %cst_52 = arith.constant dense<0.000000e+00> : vector<8x8xf32>
    %76 = tpu.matmul %75, %59, %cst_52 {dimension_numbers = #tpu.dot_dimension_numbers<[1], [0], [0], [1], [0, 0, 1, 1], [], []>} : vector<8x8xbf16>, vector<8x8xbf16>, vector<8x8xf32> -> vector<8x8xf32>
    %77 = arith.truncf %76 : vector<8x8xf32> to vector<8x8xbf16>
    %c0_53 = arith.constant 0 : index
    %c16_54 = arith.constant 16 : index
    %78 = vector.load %arg16[%c0_53, %c16_54] : memref<8x32xbf16, #tpu.memory_space<vmem>>, vector<8x8xbf16>
    tpu.vector_store %arg16[%c0_53, %c16_54], %77 {strides = array<i32>} : memref<8x32xbf16, #tpu.memory_space<vmem>>, vector<8x8xbf16>,
    %c0_55 = arith.constant 0 : index
    %c24 = arith.constant 24 : index
    %79 = vector.load %arg13[%c0_55, %c24] : memref<8x32xbf16, #tpu.memory_space<vmem>>, vector<8x8xbf16>
    %c0_56 = arith.constant 0 : index
    %c24_57 = arith.constant 24 : index
    %80 = vector.load %arg14[%c0_56, %c24_57] : memref<8x32xbf16, #tpu.memory_space<vmem>>, vector<8x8xbf16>
    %c0_58 = arith.constant 0 : index
    %c24_59 = arith.constant 24 : index
    %81 = vector.load %arg15[%c0_58, %c24_59] : memref<8x32xbf16, #tpu.memory_space<vmem>>, vector<8x8xbf16>
    "tpu.trace_start"() <{level = 10 : i32, message = "qd,kd->qk"}> : () -> ()
    %cst_60 = arith.constant dense<0.000000e+00> : vector<8x8xf32>
    %82 = tpu.matmul %79, %80, %cst_60 {dimension_numbers = #tpu.dot_dimension_numbers<[1], [1], [0], [0], [0, 0, 1, 0], [], []>} : vector<8x8xbf16>, vector<8x8xbf16>, vector<8x8xf32> -> vector<8x8xf32>
    "tpu.trace_stop"() : () -> ()
    %83 = arith.addf %82, %12 : vector<8x8xf32>
    %cst_61 = arith.constant dense<0xFF800000> : vector<8xf32>
    %84 = vector.multi_reduction <maximumf>, %83, %cst_61 [1] : vector<8x8xf32> to vector<8xf32>
    %85 = vector.shape_cast %84 : vector<8xf32> to vector<8x1xf32>
    %86 = vector.broadcast %85 : vector<8x1xf32> to vector<8x8xf32>
    %87 = arith.subf %83, %86 : vector<8x8xf32>
    %88 = math.exp %87 : vector<8x8xf32>
    %cst_62 = arith.constant dense<0.000000e+00> : vector<8xf32>
    %89 = vector.multi_reduction <add>, %88, %cst_62 [1] : vector<8x8xf32> to vector<8xf32>
    %90 = vector.shape_cast %89 : vector<8xf32> to vector<8x1xf32>
    %91 = tpu.reciprocal %90 {approx = true} : vector<8x1xf32> -> vector<8x1xf32>
    %92 = vector.broadcast %91 : vector<8x1xf32> to vector<8x8xf32>
    %93 = arith.mulf %88, %92 : vector<8x8xf32>
    %c0_63 = arith.constant 0 : index
    %c3 = arith.constant 3 : index
    %c0_64 = arith.constant 0 : index
    %c0_65 = arith.constant 0 : index
    %94 = vector.load %arg12[%c0_63, %c3, %c0_64, %c0_65] : memref<1x4x8x8xf32, #tpu.memory_space<vmem>>, vector<1x1x8x8xf32>
    %95 = vector.shape_cast %94 : vector<1x1x8x8xf32> to vector<8x8xf32>
    %96 = vector.shape_cast %93 : vector<8x8xf32> to vector<1x1x8x8xf32>
    tpu.vector_store %arg12[%c0_63, %c3, %c0_64, %c0_65], %96 {strides = array<i32>} : memref<1x4x8x8xf32, #tpu.memory_space<vmem>>, vector<1x1x8x8xf32>,
    %97 = arith.truncf %93 : vector<8x8xf32> to vector<8x8xbf16>
    %cst_66 = arith.constant dense<0.000000e+00> : vector<8x8xf32>
    %98 = tpu.matmul %97, %81, %cst_66 {dimension_numbers = #tpu.dot_dimension_numbers<[1], [0], [0], [1], [0, 0, 1, 1], [], []>} : vector<8x8xbf16>, vector<8x8xbf16>, vector<8x8xf32> -> vector<8x8xf32>
    %99 = arith.truncf %98 : vector<8x8xf32> to vector<8x8xbf16>
    %c0_67 = arith.constant 0 : index
    %c24_68 = arith.constant 24 : index
    %100 = vector.load %arg16[%c0_67, %c24_68] : memref<8x32xbf16, #tpu.memory_space<vmem>>, vector<8x8xbf16>
    tpu.vector_store %arg16[%c0_67, %c24_68], %99 {strides = array<i32>} : memref<8x32xbf16, #tpu.memory_space<vmem>>, vector<8x8xbf16>,
    %c0_69 = arith.constant 0 : index
    %c0_70 = arith.constant 0 : index
    %101 = vector.load %arg16[%c0_69, %c0_70] : memref<8x32xbf16, #tpu.memory_space<vmem>>, vector<8x32xbf16>
    %c0_71 = arith.constant 0 : index
    %c0_72 = arith.constant 0 : index
    %102 = vector.load %arg9[%c0_71, %c0_72] : memref<32x32xbf16, #tpu.memory_space<vmem>>, vector<32x32xbf16>
    %cst_73 = arith.constant dense<0.000000e+00> : vector<8x32xf32>
    %103 = tpu.matmul %101, %102, %cst_73 {dimension_numbers = #tpu.dot_dimension_numbers<[1], [0], [0], [1], [0, 0, 1, 1], [], []>} : vector<8x32xbf16>, vector<32x32xbf16>, vector<8x32xf32> -> vector<8x32xf32>
    %c0_74 = arith.constant 0 : index
    %c0_75 = arith.constant 0 : index
    %104 = vector.load %arg10[%c0_74, %c0_75] : memref<1x32xf32, #tpu.memory_space<vmem>>, vector<1x32xf32>
    %105 = vector.broadcast %104 : vector<1x32xf32> to vector<8x32xf32>
    %106 = arith.addf %103, %105 : vector<8x32xf32>
    %c0_76 = arith.constant 0 : index
    %c0_77 = arith.constant 0 : index
    %c0_78 = arith.constant 0 : index
    %107 = vector.load %arg11[%c0_76, %c0_77, %c0_78] : memref<1x8x32xf32, #tpu.memory_space<vmem>>, vector<1x8x32xf32>
    %108 = vector.shape_cast %107 : vector<1x8x32xf32> to vector<8x32xf32>
    %109 = vector.shape_cast %106 : vector<8x32xf32> to vector<1x8x32xf32>
    tpu.vector_store %arg11[%c0_76, %c0_77, %c0_78], %109 {strides = array<i32>} : memref<1x8x32xf32, #tpu.memory_space<vmem>>, vector<1x8x32xf32>,
    return
  }
  func.func @transform_0(%arg0: i32, %arg1: i32) -> (i32, i32, i32) {
    %c0_i32 = arith.constant 0 : i32
    %c0_i32_0 = arith.constant 0 : i32
    return %arg0, %arg1, %c0_i32 : i32, i32, i32
  }
  func.func @transform_1(%arg0: i32, %arg1: i32) -> (i32, i32, i32) {
    %c0_i32 = arith.constant 0 : i32
    %c0_i32_0 = arith.constant 0 : i32
    %c0_i32_1 = arith.constant 0 : i32
    return %arg0, %c0_i32, %c0_i32_0 : i32, i32, i32
  }
  func.func @transform_2(%arg0: i32, %arg1: i32) -> (i32, i32, i32) {
    %c0_i32 = arith.constant 0 : i32
    %c0_i32_0 = arith.constant 0 : i32
    %c0_i32_1 = arith.constant 0 : i32
    return %arg0, %c0_i32, %c0_i32_0 : i32, i32, i32
  }
  func.func @transform_3(%arg0: i32, %arg1: i32) -> (i32, i32, i32, i32) {
    %c0_i32 = arith.constant 0 : i32
    %c0_i32_0 = arith.constant 0 : i32
    %c0_i32_1 = arith.constant 0 : i32
    return %arg0, %c0_i32, %arg1, %c0_i32_0 : i32, i32, i32, i32
  }
  func.func @transform_4(%arg0: i32, %arg1: i32) -> (i32, i32) {
    %c0_i32 = arith.constant 0 : i32
    %c0_i32_0 = arith.constant 0 : i32
    %c0_i32_1 = arith.constant 0 : i32
    return %c0_i32, %c0_i32_0 : i32, i32
  }
  func.func @transform_5(%arg0: i32, %arg1: i32) -> (i32, i32) {
    %c0_i32 = arith.constant 0 : i32
    %c0_i32_0 = arith.constant 0 : i32
    %c0_i32_1 = arith.constant 0 : i32
    return %c0_i32, %c0_i32_0 : i32, i32
  }
  func.func @transform_6(%arg0: i32, %arg1: i32) -> (i32, i32) {
    %c0_i32 = arith.constant 0 : i32
    %c0_i32_0 = arith.constant 0 : i32
    %c0_i32_1 = arith.constant 0 : i32
    return %c0_i32, %c0_i32_0 : i32, i32
  }
  func.func @transform_7(%arg0: i32, %arg1: i32) -> (i32, i32) {
    %c0_i32 = arith.constant 0 : i32
    %c0_i32_0 = arith.constant 0 : i32
    %c0_i32_1 = arith.constant 0 : i32
    return %c0_i32, %c0_i32_0 : i32, i32
  }
  func.func @transform_8(%arg0: i32, %arg1: i32) -> (i32, i32) {
    %c0_i32 = arith.constant 0 : i32
    %c0_i32_0 = arith.constant 0 : i32
    %c0_i32_1 = arith.constant 0 : i32
    return %c0_i32, %c0_i32_0 : i32, i32
  }
  func.func @transform_9(%arg0: i32, %arg1: i32) -> (i32, i32, i32) {
    %c0_i32 = arith.constant 0 : i32
    %c0_i32_0 = arith.constant 0 : i32
    return %arg0, %arg1, %c0_i32 : i32, i32, i32
  }
  func.func @transform_10(%arg0: i32, %arg1: i32) -> (i32, i32, i32, i32) {
    %c0_i32 = arith.constant 0 : i32
    %c0_i32_0 = arith.constant 0 : i32
    %c0_i32_1 = arith.constant 0 : i32
    return %arg0, %c0_i32, %arg1, %c0_i32_0 : i32, i32, i32, i32
  }
}

</mosaic_0001>

<llo_original>
// kernel: tpu_custom_call.1
$region0: #{tpu_custom_call.1}
  #allocation0 [shape = 'u32[]', space=smem, size = 0x4, offset = 0x4, fixed_abs, tag = 'smem constant byte address 0x4 - core index']
  #allocation1 [shape = 'u32[144,128]{1,0:T(1,128)}', space=vmem, size = 0x12000, scoped, tag = 'internal scratch']
  #allocation2 [shape = 'bf16[8,32]{1,0:T(8,128)(2,1)}', space=vmem, size = 0x800, scoped, tag = 'scratch operand']
  #allocation3 [shape = 'bf16[8,32]{1,0:T(8,128)(2,1)}', space=vmem, size = 0x800, scoped, tag = 'scratch operand']
  #allocation4 [shape = 'bf16[8,32]{1,0:T(8,128)(2,1)}', space=vmem, size = 0x800, scoped, tag = 'scratch operand']
  #allocation5 [shape = 'bf16[8,32]{1,0:T(8,128)(2,1)}', space=vmem, size = 0x800, scoped, tag = 'scratch operand']
  %s0 = inlined_call_operand.hbm [shape: f32[2,8,32], index: 0, kind: input, shape index: {}]
  %s1 = inlined_call_operand.hbm [shape: f32[2,8,32], index: 1, kind: input, shape index: {}]
  %s2 = inlined_call_operand.hbm [shape: f32[2,8,32], index: 2, kind: input, shape index: {}]
  %s3 = inlined_call_operand.hbm [shape: bf16[2,1,8,8], index: 3, kind: input, shape index: {}]
  %s4 = inlined_call_operand.hbm [shape: bf16[32,32], index: 4, kind: input, shape index: {}]
  %s5 = inlined_call_operand.hbm [shape: bf16[32,32], index: 5, kind: input, shape index: {}]
  %s6 = inlined_call_operand.hbm [shape: bf16[32,32], index: 6, kind: input, shape index: {}]
  %s7 = inlined_call_operand.hbm [shape: bf16[32,32], index: 7, kind: input, shape index: {}]
  %s8 = inlined_call_operand.vmem [shape: f32[1,32], index: 8, kind: input, shape index: {}]
  %s9 = inlined_call_operand.hbm [shape: f32[2,8,32], index: 9, kind: output, shape index: {0}]
  %s10 = inlined_call_operand.hbm [shape: f32[2,4,8,8], index: 10, kind: output, shape index: {1}]
  %11 = xla_tuple %s9, %s10
  %s12 = sld [smem:[#allocation0]]
  $region113: #{tpu_custom_call.1} parent=0
    _
  %s14 = ssub.s32 1, %s12
  %s15 = scalar_select 0, %s14, %s12
  $region1: #{tpu_custom_call.1} parent=0
    #allocation6 [shape = 'u8[8192]{0}', space=vmem, size = 0x2000, scoped, tag = 'input window, operand 0']
    #allocation7 [shape = 's32[2]{0}', space=sflag, size = 0x8, scoped, tag = 'scoped memory for tpu_custom_call.1']
    #allocation8 [shape = 's32[2]{0}', space=sflag, size = 0x8, scoped, tag = 'scoped memory for tpu_custom_call.1']
    #allocation9 [shape = 'u8[8192]{0}', space=vmem, size = 0x2000, scoped, tag = 'input window, operand 1']
    #allocation10 [shape = 's32[2]{0}', space=sflag, size = 0x8, scoped, tag = 'scoped memory for tpu_custom_call.1']
    #allocation11 [shape = 'u8[8192]{0}', space=vmem, size = 0x2000, scoped, tag = 'input window, operand 2']
    #allocation12 [shape = 'u8[4096]{0}', space=vmem, size = 0x1000, scoped, tag = 'input window, operand 3']
    #allocation13 [shape = 's32[2]{0}', space=sflag, size = 0x8, scoped, tag = 'scoped memory for tpu_custom_call.1']
    #allocation14 [shape = 'u8[8192]{0}', space=vmem, size = 0x2000, scoped, tag = 'input window, operand 4, single buffered']
    #allocation15 [shape = 'u8[8192]{0}', space=vmem, size = 0x2000, scoped, tag = 'input window, operand 5, single buffered']
    #allocation16 [shape = 's32[1]{0}', space=sflag, size = 0x4, scoped, tag = 'scoped memory for tpu_custom_call.1']
    #allocation17 [shape = 'u8[8192]{0}', space=vmem, size = 0x2000, scoped, tag = 'input window, operand 6, single buffered']
    #allocation18 [shape = 'u8[8192]{0}', space=vmem, size = 0x2000, scoped, tag = 'input window, operand 7, single buffered']
    #allocation19 [shape = 's32[1]{0}', space=sflag, size = 0x4, scoped, tag = 'scoped memory for tpu_custom_call.1']
    #allocation20 [shape = 'u8[8192]{0}', space=vmem, size = 0x2000, scoped, tag = 'output window, operand 0']
    #allocation21 [shape = 'u8[32768]{0}', space=vmem, size = 0x8000, scoped, tag = 'output window, operand 1']
    #allocation22 [shape = 's32[2]{0}', space=sflag, size = 0x8, scoped, tag = 'scoped memory for tpu_custom_call.1']
    %16 = vsyncpa [#allocation7], 0
    %s17 = scalar_lea.sflag [#allocation7], 1
    %18 = vsyncpa %s17, 0
    %19 = vsyncpa [#allocation10], 0
    %s20 = scalar_lea.sflag [#allocation10], 1
    %21 = vsyncpa %s20, 0
    %22 = vsyncpa [#allocation13], 0
    %s23 = scalar_lea.sflag [#allocation13], 1
    %24 = vsyncpa %s23, 0
    %25 = vsyncpa [#allocation16], 0
    %26 = vsyncpa [#allocation19], 0
    %27 = vsyncpa [#allocation8], 0
    %s28 = scalar_lea.sflag [#allocation8], 1
    %29 = vsyncpa %s28, 0
    %30 = vsyncpa [#allocation22], 0
    %s31 = scalar_lea.sflag [#allocation22], 1
    %32 = vsyncpa %s31, 0
    loop: start=0, step=1, limit=4
    $region2: #{tpu_custom_call.1} parent=1 // loop_pre_header
      _
    $region3: #{tpu_custom_call.1} parent=1 // loop_header
      %s34 = sphi 0, %s38
      %p35 = scmp.ge.s32.totalorder %s34, 4
      %s41 = sphi 0, %s53
      %s42 = sphi 0, %s49
      %s43 = sphi 0, %s41
      %s44 = sphi 0, %s42
      %s45 = sphi 0, %s43
      %s46 = sphi 0, %s44
      %s58 = sphi 0, %s60
      %s61 = sphi 0, %s58
      %s62 = sphi 0, %s61
      %s78 = sphi 0, %s62
      %s84 = sphi 0, %s86
      %s87 = sphi 0, %s84
      %s88 = sphi 0, %s87
      %s104 = sphi 0, %s88
      %s110 = sphi 0, %s112
      %s113 = sphi 0, %s110
      %s114 = sphi 0, %s113
      %s130 = sphi 0, %s114
      %s138 = sphi 0, %s140
      %s141 = sphi 0, %s138
      %s142 = sphi 0, %s141
      %s158 = sphi 0, %s142
      %s162 = sphi 0, %s162
      %s164 = sphi 0, %s162
      %s165 = sphi 0, %s164
      %s179 = sphi 0, %s165
      %s183 = sphi 0, %s183
      %s185 = sphi 0, %s183
      %s186 = sphi 0, %s185
      %s200 = sphi 0, %s186
      %s204 = sphi 0, %s204
      %s206 = sphi 0, %s204
      %s207 = sphi 0, %s206
      %s221 = sphi 0, %s207
      %s225 = sphi 0, %s225
      %s227 = sphi 0, %s225
      %s228 = sphi 0, %s227
      %s242 = sphi 0, %s228
      %s246 = sphi 0, %s246
      %s248 = sphi 0, %s246
      %s249 = sphi 0, %s248
      %s263 = sphi 0, %s249
      %s271 = sphi 0, %s273
      %s274 = sphi 0, %s271
      %s275 = sphi 0, %s274
      %s291 = sphi 0, %s275
      %s299 = sphi 0, %s301
      %s302 = sphi 0, %s299
      %s303 = sphi 0, %s302
      %s319 = sphi 0, %s303
    $region4: #{tpu_custom_call.1} parent=1 // loop_header_branch
      %37 = sbr.rel (%p35) target = $region8
    $region5: #{tpu_custom_call.1} parent=1 // loop_body
      %s39 = ssub.s32 %s34, 1
      %s40 = ssub.s32 %s34, 2
      %s47 = sadd.s32 1, %s42
      %p48 = scmp.ge.s32.totalorder %s47, 1
      %s49 = scalar_select %p48, 0, %s47
      %s50 = sadd.s32 1, %s41
      %s51 = scalar_select %p48, %s50, %s41
      %p52 = scmp.ge.s32.totalorder %s51, 2
      %s53 = scalar_select %p52, 0, %s51
      %s54 = ssub.s32 %s41, %s53
      %s55 = ssub.s32 %s42, %s49
      %s56 = sor.u32 %s54, %s55
      %p57 = scmp.eq.s32.totalorder %s56, 0
      %s59 = sadd.s32 %s58, 1
      %s60 = scalar_select %p57, %s58, %s59
      %p63 = pneg %p57
      %p64 = scmp.eq.s32.totalorder %s34, 1
      %p65 = por %p63, %p64
      %p66 = scmp.ne.s32.totalorder %s58, %s61
      %p67 = scmp.eq.s32.totalorder %s34, 0
      %p68 = por %p66, %p67
      %p69 = scmp.ne.s32.totalorder %s58, %s61
      %p70 = scmp.eq.s32.totalorder %s39, 1
      %p71 = por %p69, %p70
      %p72 = scmp.ne.s32.totalorder %s61, %s62
      %p73 = scmp.eq.s32.totalorder %s39, 0
      %p74 = por %p72, %p73
      %p75 = scmp.ne.s32.totalorder %s61, %s62
      %p76 = scmp.eq.s32.totalorder %s40, 1
      %p77 = por %p75, %p76
      %p79 = scmp.ne.s32.totalorder %s62, %s78
      %p80 = scmp.eq.s32.totalorder %s40, 0
      %p81 = por %p79, %p80
      %s82 = ssub.s32 %s41, %s53
      %p83 = scmp.eq.s32.totalorder %s82, 0
      %s85 = sadd.s32 %s84, 1
      %s86 = scalar_select %p83, %s84, %s85
      %p89 = pneg %p83
      %p90 = scmp.eq.s32.totalorder %s34, 1
      %p91 = por %p89, %p90
      %p92 = scmp.ne.s32.totalorder %s84, %s87
      %p93 = scmp.eq.s32.totalorder %s34, 0
      %p94 = por %p92, %p93
      %p95 = scmp.ne.s32.totalorder %s84, %s87
      %p96 = scmp.eq.s32.totalorder %s39, 1
      %p97 = por %p95, %p96
      %p98 = scmp.ne.s32.totalorder %s87, %s88
      %p99 = scmp.eq.s32.totalorder %s39, 0
      %p100 = por %p98, %p99
      %p101 = scmp.ne.s32.totalorder %s87, %s88
      %p102 = scmp.eq.s32.totalorder %s40, 1
      %p103 = por %p101, %p102
      %p105 = scmp.ne.s32.totalorder %s88, %s104
      %p106 = scmp.eq.s32.totalorder %s40, 0
      %p107 = por %p105, %p106
      %s108 = ssub.s32 %s41, %s53
      %p109 = scmp.eq.s32.totalorder %s108, 0
      %s111 = sadd.s32 %s110, 1
      %s112 = scalar_select %p109, %s110, %s111
      %p115 = pneg %p109
      %p116 = scmp.eq.s32.totalorder %s34, 1
      %p117 = por %p115, %p116
      %p118 = scmp.ne.s32.totalorder %s110, %s113
      %p119 = scmp.eq.s32.totalorder %s34, 0
      %p120 = por %p118, %p119
      %p121 = scmp.ne.s32.totalorder %s110, %s113
      %p122 = scmp.eq.s32.totalorder %s39, 1
      %p123 = por %p121, %p122
      %p124 = scmp.ne.s32.totalorder %s113, %s114
      %p125 = scmp.eq.s32.totalorder %s39, 0
      %p126 = por %p124, %p125
      %p127 = scmp.ne.s32.totalorder %s113, %s114
      %p128 = scmp.eq.s32.totalorder %s40, 1
      %p129 = por %p127, %p128
      %p131 = scmp.ne.s32.totalorder %s114, %s130
      %p132 = scmp.eq.s32.totalorder %s40, 0
      %p133 = por %p131, %p132
      %s134 = ssub.s32 %s41, %s53
      %s135 = ssub.s32 %s42, %s49
      %s136 = sor.u32 %s134, %s135
      %p137 = scmp.eq.s32.totalorder %s136, 0
      %s139 = sadd.s32 %s138, 1
      %s140 = scalar_select %p137, %s138, %s139
      %p143 = pneg %p137
      %p144 = scmp.eq.s32.totalorder %s34, 1
      %p145 = por %p143, %p144
      %p146 = scmp.ne.s32.totalorder %s138, %s141
      %p147 = scmp.eq.s32.totalorder %s34, 0
      %p148 = por %p146, %p147
      %p149 = scmp.ne.s32.totalorder %s138, %s141
      %p150 = scmp.eq.s32.totalorder %s39, 1
      %p151 = por %p149, %p150
      %p152 = scmp.ne.s32.totalorder %s141, %s142
      %p153 = scmp.eq.s32.totalorder %s39, 0
      %p154 = por %p152, %p153
      %p155 = scmp.ne.s32.totalorder %s141, %s142
      %p156 = scmp.eq.s32.totalorder %s40, 1
      %p157 = por %p155, %p156
      %p159 = scmp.ne.s32.totalorder %s142, %s158
      %p160 = scmp.eq.s32.totalorder %s40, 0
      %p161 = por %p159, %p160
      %s163 = sadd.s32 %s162, 1
      %p166 = scmp.eq.s32.totalorder %s34, 1
      %p167 = scmp.ne.s32.totalorder %s162, %s164
      %p168 = scmp.eq.s32.totalorder %s34, 0
      %p169 = por %p167, %p168
      %p170 = scmp.ne.s32.totalorder %s162, %s164
      %p171 = scmp.eq.s32.totalorder %s39, 1
      %p172 = por %p170, %p171
      %p173 = scmp.ne.s32.totalorder %s164, %s165
      %p174 = scmp.eq.s32.totalorder %s39, 0
      %p175 = por %p173, %p174
      %p176 = scmp.ne.s32.totalorder %s164, %s165
      %p177 = scmp.eq.s32.totalorder %s40, 1
      %p178 = por %p176, %p177
      %p180 = scmp.ne.s32.totalorder %s165, %s179
      %p181 = scmp.eq.s32.totalorder %s40, 0
      %p182 = por %p180, %p181
      %s184 = sadd.s32 %s183, 1
      %p187 = scmp.eq.s32.totalorder %s34, 1
      %p188 = scmp.ne.s32.totalorder %s183, %s185
      %p189 = scmp.eq.s32.totalorder %s34, 0
      %p190 = por %p188, %p189
      %p191 = scmp.ne.s32.totalorder %s183, %s185
      %p192 = scmp.eq.s32.totalorder %s39, 1
      %p193 = por %p191, %p192
      %p194 = scmp.ne.s32.totalorder %s185, %s186
      %p195 = scmp.eq.s32.totalorder %s39, 0
      %p196 = por %p194, %p195
      %p197 = scmp.ne.s32.totalorder %s185, %s186
      %p198 = scmp.eq.s32.totalorder %s40, 1
      %p199 = por %p197, %p198
      %p201 = scmp.ne.s32.totalorder %s186, %s200
      %p202 = scmp.eq.s32.totalorder %s40, 0
      %p203 = por %p201, %p202
      %s205 = sadd.s32 %s204, 1
      %p208 = scmp.eq.s32.totalorder %s34, 1
      %p209 = scmp.ne.s32.totalorder %s204, %s206
      %p210 = scmp.eq.s32.totalorder %s34, 0
      %p211 = por %p209, %p210
      %p212 = scmp.ne.s32.totalorder %s204, %s206
      %p213 = scmp.eq.s32.totalorder %s39, 1
      %p214 = por %p212, %p213
      %p215 = scmp.ne.s32.totalorder %s206, %s207
      %p216 = scmp.eq.s32.totalorder %s39, 0
      %p217 = por %p215, %p216
      %p218 = scmp.ne.s32.totalorder %s206, %s207
      %p219 = scmp.eq.s32.totalorder %s40, 1
      %p220 = por %p218, %p219
      %p222 = scmp.ne.s32.totalorder %s207, %s221
      %p223 = scmp.eq.s32.totalorder %s40, 0
      %p224 = por %p222, %p223
      %s226 = sadd.s32 %s225, 1
      %p229 = scmp.eq.s32.totalorder %s34, 1
      %p230 = scmp.ne.s32.totalorder %s225, %s227
      %p231 = scmp.eq.s32.totalorder %s34, 0
      %p232 = por %p230, %p231
      %p233 = scmp.ne.s32.totalorder %s225, %s227
      %p234 = scmp.eq.s32.totalorder %s39, 1
      %p235 = por %p233, %p234
      %p236 = scmp.ne.s32.totalorder %s227, %s228
      %p237 = scmp.eq.s32.totalorder %s39, 0
      %p238 = por %p236, %p237
      %p239 = scmp.ne.s32.totalorder %s227, %s228
      %p240 = scmp.eq.s32.totalorder %s40, 1
      %p241 = por %p239, %p240
      %p243 = scmp.ne.s32.totalorder %s228, %s242
      %p244 = scmp.eq.s32.totalorder %s40, 0
      %p245 = por %p243, %p244
      %s247 = sadd.s32 %s246, 1
      %p250 = scmp.eq.s32.totalorder %s34, 1
      %p251 = scmp.ne.s32.totalorder %s246, %s248
      %p252 = scmp.eq.s32.totalorder %s34, 0
      %p253 = por %p251, %p252
      %p254 = scmp.ne.s32.totalorder %s246, %s248
      %p255 = scmp.eq.s32.totalorder %s39, 1
      %p256 = por %p254, %p255
      %p257 = scmp.ne.s32.totalorder %s248, %s249
      %p258 = scmp.eq.s32.totalorder %s39, 0
      %p259 = por %p257, %p258
      %p260 = scmp.ne.s32.totalorder %s248, %s249
      %p261 = scmp.eq.s32.totalorder %s40, 1
      %p262 = por %p260, %p261
      %p264 = scmp.ne.s32.totalorder %s249, %s263
      %p265 = scmp.eq.s32.totalorder %s40, 0
      %p266 = por %p264, %p265
      %s267 = ssub.s32 %s41, %s53
      %s268 = ssub.s32 %s42, %s49
      %s269 = sor.u32 %s267, %s268
      %p270 = scmp.eq.s32.totalorder %s269, 0
      %s272 = sadd.s32 %s271, 1
      %s273 = scalar_select %p270, %s271, %s272
      %p276 = pneg %p270
      %p277 = scmp.eq.s32.totalorder %s34, 1
      %p278 = por %p276, %p277
      %p279 = scmp.ne.s32.totalorder %s271, %s274
      %p280 = scmp.eq.s32.totalorder %s34, 0
      %p281 = por %p279, %p280
      %p282 = scmp.ne.s32.totalorder %s271, %s274
      %p283 = scmp.eq.s32.totalorder %s39, 1
      %p284 = por %p282, %p283
      %p285 = scmp.ne.s32.totalorder %s274, %s275
      %p286 = scmp.eq.s32.totalorder %s39, 0
      %p287 = por %p285, %p286
      %p288 = scmp.ne.s32.totalorder %s274, %s275
      %p289 = scmp.eq.s32.totalorder %s40, 1
      %p290 = por %p288, %p289
      %p292 = scmp.ne.s32.totalorder %s275, %s291
      %p293 = scmp.eq.s32.totalorder %s40, 0
      %p294 = por %p292, %p293
      %s295 = ssub.s32 %s41, %s53
      %s296 = ssub.s32 %s42, %s49
      %s297 = sor.u32 %s295, %s296
      %p298 = scmp.eq.s32.totalorder %s297, 0
      %s300 = sadd.s32 %s299, 1
      %s301 = scalar_select %p298, %s299, %s300
      %p304 = pneg %p298
      %p305 = scmp.eq.s32.totalorder %s34, 1
      %p306 = por %p304, %p305
      %p307 = scmp.ne.s32.totalorder %s299, %s302
      %p308 = scmp.eq.s32.totalorder %s34, 0
      %p309 = por %p307, %p308
      %p310 = scmp.ne.s32.totalorder %s299, %s302
      %p311 = scmp.eq.s32.totalorder %s39, 1
      %p312 = por %p310, %p311
      %p313 = scmp.ne.s32.totalorder %s302, %s303
      %p314 = scmp.eq.s32.totalorder %s39, 0
      %p315 = por %p313, %p314
      %p316 = scmp.ne.s32.totalorder %s302, %s303
      %p317 = scmp.eq.s32.totalorder %s40, 1
      %p318 = por %p316, %p317
      %p320 = scmp.ne.s32.totalorder %s303, %s319
      %p321 = scmp.eq.s32.totalorder %s40, 0
      %p322 = por %p320, %p321
      %p323 = scmp.le.s32.totalorder 1, %s34
      %p324 = scmp.lt.s32.totalorder %s34, 3
      %p325 = pnand %p323, %p324
      %p326 = pneg %p325
      // Predicated region
      $region9: #{tpu_custom_call.1} parent=5 // pred_check
        _
      $region10: #{tpu_custom_call.1} parent=5 // pred_check_branch
        %328 = sbr.rel (%p325) target = $region12
      $region11: #{tpu_custom_call.1} parent=5 // pred_region
        %s329 = ssub.s32 %s34, 1
        // Predicated region
        $region13: #{tpu_custom_call.1} parent=11 // pred_check
          %p330 = pneg %p175
        $region14: #{tpu_custom_call.1} parent=11 // pred_check_branch
          %332 = sbr.rel (%p330) target = $region16
        $region15: #{tpu_custom_call.1} parent=11 // pred_region
          %s334 = ssub.s32 256, 256
          %335 = vsyncadd [#allocation13], %s334
          %s336 = sshll.u32 [#allocation14], 4
          %s337 = int_to_ptr.vmem [resolvable:$true] %s336
          %342 = dma.hbm_to_vmem [thread:$0]  %s4, 256, %s337, [#allocation13], 64, 64, 4
        $region16: #{tpu_custom_call.1} parent=11 // pred_fallthru
          _
        // Predicated region
        $region17: #{tpu_custom_call.1} parent=11 // pred_check
          %p343 = pneg %p196
        $region18: #{tpu_custom_call.1} parent=11 // pred_check_branch
          %345 = sbr.rel (%p343) target = $region20
        $region19: #{tpu_custom_call.1} parent=11 // pred_region
          %s347 = ssub.s32 256, 256
          %348 = vsyncadd [#allocation16], %s347
          %s349 = sshll.u32 [#allocation15], 4
          %s350 = int_to_ptr.vmem [resolvable:$true] %s349
          %355 = dma.hbm_to_vmem [thread:$0]  %s5, 256, %s350, [#allocation16], 64, 64, 4
        $region20: #{tpu_custom_call.1} parent=11 // pred_fallthru
          _
        // Predicated region
        $region21: #{tpu_custom_call.1} parent=11 // pred_check
          %p356 = pneg %p217
        $region22: #{tpu_custom_call.1} parent=11 // pred_check_branch
          %358 = sbr.rel (%p356) target = $region24
        $region23: #{tpu_custom_call.1} parent=11 // pred_region
          %s360 = ssub.s32 256, 256
          %361 = vsyncadd [#allocation16], %s360
          %s362 = sshll.u32 [#allocation17], 4
          %s363 = int_to_ptr.vmem [resolvable:$true] %s362
          %368 = dma.hbm_to_vmem [thread:$0]  %s6, 256, %s363, [#allocation16], 64, 64, 4
        $region24: #{tpu_custom_call.1} parent=11 // pred_fallthru
          _
        // Predicated region
        $region25: #{tpu_custom_call.1} parent=11 // pred_check
          %p369 = pneg %p238
        $region26: #{tpu_custom_call.1} parent=11 // pred_check_branch
          %371 = sbr.rel (%p369) target = $region28
        $region27: #{tpu_custom_call.1} parent=11 // pred_region
          %s373 = ssub.s32 256, 256
          %374 = vsyncadd [#allocation19], %s373
          %s375 = sshll.u32 [#allocation18], 4
          %s376 = int_to_ptr.vmem [resolvable:$true] %s375
          %381 = dma.hbm_to_vmem [thread:$0]  %s7, 256, %s376, [#allocation19], 64, 64, 4
        $region28: #{tpu_custom_call.1} parent=11 // pred_fallthru
          _
        // Predicated region
        $region29: #{tpu_custom_call.1} parent=11 // pred_check
          %p382 = pneg %p259
        $region30: #{tpu_custom_call.1} parent=11 // pred_check_branch
          %384 = sbr.rel (%p382) target = $region32
        $region31: #{tpu_custom_call.1} parent=11 // pred_region
          _
        $region32: #{tpu_custom_call.1} parent=11 // pred_fallthru
          _
      $region12: #{tpu_custom_call.1} parent=5 // pred_fallthru
        _
      %p385 = scmp.lt.s32.totalorder %s34, 2
      // Predicated region
      $region33: #{tpu_custom_call.1} parent=5 // pred_check
        %p386 = pneg %p385
      $region34: #{tpu_custom_call.1} parent=5 // pred_check_branch
        %388 = sbr.rel (%p386) target = $region36
      $region35: #{tpu_custom_call.1} parent=5 // pred_region
        // Predicated region
        $region37: #{tpu_custom_call.1} parent=35 // pred_check
          %p389 = pneg %p68
        $region38: #{tpu_custom_call.1} parent=35 // pred_check_branch
          %391 = sbr.rel (%p389) target = $region40
        $region39: #{tpu_custom_call.1} parent=35 // pred_region
          %s392 = sand.u32 %s58, 1
          %s393 = scalar_lea.sflag [#allocation7], %s392
          %s394 = sand.u32 %s58, 1
          %s395 = smul.addr %s394, 8
          %s396 = scalar_lea.vmem [#allocation6], %s395
          %s398 = ssub.s32 128, 128
          %399 = vsyncadd %s393, %s398
          %s400 = sadd.s32 %s42, %s41
          %s401 = smul.addr %s400, 128
          %s402 = scalar_lea.hbm %s0, %s401
          %s404 = sshll.u32 %s396, 4
          %s405 = int_to_ptr.vmem [resolvable:$true] %s404
          %407 = dma.hbm_to_vmem [thread:$0]  %s402, 128, %s405, %s393
        $region40: #{tpu_custom_call.1} parent=35 // pred_fallthru
          _
        // Predicated region
        $region41: #{tpu_custom_call.1} parent=35 // pred_check
          %p408 = pneg %p94
        $region42: #{tpu_custom_call.1} parent=35 // pred_check_branch
          %410 = sbr.rel (%p408) target = $region44
        $region43: #{tpu_custom_call.1} parent=35 // pred_region
          %s411 = sand.u32 %s34, 1
          %s412 = scalar_lea.sflag [#allocation10], %s411
          %s413 = sand.u32 %s84, 1
          %s414 = smul.addr %s413, 8
          %s415 = scalar_lea.vmem [#allocation9], %s414
          %s417 = ssub.s32 128, 128
          %418 = vsyncadd %s412, %s417
          %s419 = smul.addr %s41, 128
          %s420 = scalar_lea.hbm %s1, %s419
          %s422 = sshll.u32 %s415, 4
          %s423 = int_to_ptr.vmem [resolvable:$true] %s422
          %425 = dma.hbm_to_vmem [thread:$0]  %s420, 128, %s423, %s412
        $region44: #{tpu_custom_call.1} parent=35 // pred_fallthru
          _
        // Predicated region
        $region45: #{tpu_custom_call.1} parent=35 // pred_check
          %p426 = pneg %p120
        $region46: #{tpu_custom_call.1} parent=35 // pred_check_branch
          %428 = sbr.rel (%p426) target = $region48
        $region47: #{tpu_custom_call.1} parent=35 // pred_region
          %s429 = sand.u32 %s34, 1
          %s430 = scalar_lea.sflag [#allocation10], %s429
          %s431 = sand.u32 %s110, 1
          %s432 = smul.addr %s431, 8
          %s433 = scalar_lea.vmem [#allocation11], %s432
          %s435 = ssub.s32 128, 128
          %436 = vsyncadd %s430, %s435
          %s437 = smul.addr %s41, 128
          %s438 = scalar_lea.hbm %s2, %s437
          %s440 = sshll.u32 %s433, 4
          %s441 = int_to_ptr.vmem [resolvable:$true] %s440
          %443 = dma.hbm_to_vmem [thread:$0]  %s438, 128, %s441, %s430
        $region48: #{tpu_custom_call.1} parent=35 // pred_fallthru
          _
        // Predicated region
        $region49: #{tpu_custom_call.1} parent=35 // pred_check
          %p444 = pneg %p148
        $region50: #{tpu_custom_call.1} parent=35 // pred_check_branch
          %446 = sbr.rel (%p444) target = $region52
        $region51: #{tpu_custom_call.1} parent=35 // pred_region
          %s447 = sand.u32 %s34, 1
          %s448 = scalar_lea.sflag [#allocation13], %s447
          %s449 = sand.u32 %s138, 1
          %s450 = smul.addr %s449, 4
          %s451 = scalar_lea.vmem [#allocation12], %s450
          %s453 = ssub.s32 64, 64
          %454 = vsyncadd %s448, %s453
          %s455 = sadd.s32 %s42, %s41
          %s456 = smul.addr %s455, 64
          %s457 = scalar_lea.hbm %s3, %s456
          %s459 = sshll.u32 %s451, 4
          %s460 = int_to_ptr.vmem [resolvable:$true] %s459
          %462 = dma.hbm_to_vmem [thread:$0]  %s457, 64, %s460, %s448
        $region52: #{tpu_custom_call.1} parent=35 // pred_fallthru
          _
      $region36: #{tpu_custom_call.1} parent=5 // pred_fallthru
        _
      %p463 = scmp.le.s32.totalorder 1, %s34
      %p464 = scmp.lt.s32.totalorder %s34, 3
      %p465 = pnand %p463, %p464
      %p466 = pneg %p465
      // Predicated region
      $region53: #{tpu_custom_call.1} parent=5 // pred_check
        _
      $region54: #{tpu_custom_call.1} parent=5 // pred_check_branch
        %468 = sbr.rel (%p465) target = $region56
      $region55: #{tpu_custom_call.1} parent=5 // pred_region
        %s469 = ssub.s32 %s34, 1
        %s470 = sand.u32 %s61, 1
        %s471 = scalar_lea.sflag [#allocation7], %s470
        %s472 = sand.u32 %s61, 1
        %s473 = smul.addr %s472, 8
        %s474 = scalar_lea.vmem [#allocation6], %s473
        // Predicated region
        $region57: #{tpu_custom_call.1} parent=55 // pred_check
          %p475 = pneg %p74
        $region58: #{tpu_custom_call.1} parent=55 // pred_check_branch
          %477 = sbr.rel (%p475) target = $region60
        $region59: #{tpu_custom_call.1} parent=55 // pred_region
          %478 = dma.done %s471, 128
        $region60: #{tpu_custom_call.1} parent=55 // pred_fallthru
          _
        %s479 = sand.u32 %s39, 1
        %s480 = scalar_lea.sflag [#allocation10], %s479
        %s481 = sand.u32 %s87, 1
        %s482 = smul.addr %s481, 8
        %s483 = scalar_lea.vmem [#allocation9], %s482
        // Predicated region
        $region61: #{tpu_custom_call.1} parent=55 // pred_check
          %p484 = pneg %p100
        $region62: #{tpu_custom_call.1} parent=55 // pred_check_branch
          %486 = sbr.rel (%p484) target = $region64
        $region63: #{tpu_custom_call.1} parent=55 // pred_region
          %487 = dma.done %s480, 128
        $region64: #{tpu_custom_call.1} parent=55 // pred_fallthru
          _
        %s488 = sand.u32 %s39, 1
        %s489 = scalar_lea.sflag [#allocation10], %s488
        %s490 = sand.u32 %s113, 1
        %s491 = smul.addr %s490, 8
        %s492 = scalar_lea.vmem [#allocation11], %s491
        // Predicated region
        $region65: #{tpu_custom_call.1} parent=55 // pred_check
          %p493 = pneg %p126
        $region66: #{tpu_custom_call.1} parent=55 // pred_check_branch
          %495 = sbr.rel (%p493) target = $region68
        $region67: #{tpu_custom_call.1} parent=55 // pred_region
          %496 = dma.done %s489, 128
        $region68: #{tpu_custom_call.1} parent=55 // pred_fallthru
          _
        %s497 = sand.u32 %s39, 1
        %s498 = scalar_lea.sflag [#allocation13], %s497
        %s499 = sand.u32 %s141, 1
        %s500 = smul.addr %s499, 4
        %s501 = scalar_lea.vmem [#allocation12], %s500
        // Predicated region
        $region69: #{tpu_custom_call.1} parent=55 // pred_check
          %p502 = pneg %p154
        $region70: #{tpu_custom_call.1} parent=55 // pred_check_branch
          %504 = sbr.rel (%p502) target = $region72
        $region71: #{tpu_custom_call.1} parent=55 // pred_region
          %505 = dma.done %s498, 64
        $region72: #{tpu_custom_call.1} parent=55 // pred_fallthru
          _
        // Predicated region
        $region73: #{tpu_custom_call.1} parent=55 // pred_check
          %p506 = pneg %p175
        $region74: #{tpu_custom_call.1} parent=55 // pred_check_branch
          %508 = sbr.rel (%p506) target = $region76
        $region75: #{tpu_custom_call.1} parent=55 // pred_region
          %509 = dma.done [#allocation13], 256
        $region76: #{tpu_custom_call.1} parent=55 // pred_fallthru
          _
        // Predicated region
        $region77: #{tpu_custom_call.1} parent=55 // pred_check
          %p510 = pneg %p196
        $region78: #{tpu_custom_call.1} parent=55 // pred_check_branch
          %512 = sbr.rel (%p510) target = $region80
        $region79: #{tpu_custom_call.1} parent=55 // pred_region
          %513 = dma.done [#allocation16], 256
        $region80: #{tpu_custom_call.1} parent=55 // pred_fallthru
          _
        // Predicated region
        $region81: #{tpu_custom_call.1} parent=55 // pred_check
          %p514 = pneg %p217
        $region82: #{tpu_custom_call.1} parent=55 // pred_check_branch
          %516 = sbr.rel (%p514) target = $region84
        $region83: #{tpu_custom_call.1} parent=55 // pred_region
          %517 = dma.done [#allocation16], 256
        $region84: #{tpu_custom_call.1} parent=55 // pred_fallthru
          _
        // Predicated region
        $region85: #{tpu_custom_call.1} parent=55 // pred_check
          %p518 = pneg %p238
        $region86: #{tpu_custom_call.1} parent=55 // pred_check_branch
          %520 = sbr.rel (%p518) target = $region88
        $region87: #{tpu_custom_call.1} parent=55 // pred_region
          %521 = dma.done [#allocation19], 256
        $region88: #{tpu_custom_call.1} parent=55 // pred_fallthru
          _
        %s522 = sand.u32 %s61, 1
        %s523 = scalar_lea.sflag [#allocation7], %s522
        %s524 = sand.u32 %s61, 1
        %s525 = smul.addr %s524, 8
        %s526 = scalar_lea.vmem [#allocation6], %s525
        %p527 = pneg %p74
        %p528 = pneg %p71
        %s529 = sand.u32 %s39, 1
        %s530 = scalar_lea.sflag [#allocation10], %s529
        %s531 = sand.u32 %s87, 1
        %s532 = smul.addr %s531, 8
        %s533 = scalar_lea.vmem [#allocation9], %s532
        %p534 = pneg %p100
        %p535 = pneg %p97
        %s536 = sand.u32 %s39, 1
        %s537 = scalar_lea.sflag [#allocation10], %s536
        %s538 = sand.u32 %s113, 1
        %s539 = smul.addr %s538, 8
        %s540 = scalar_lea.vmem [#allocation11], %s539
        %p541 = pneg %p126
        %p542 = pneg %p123
        %s543 = sand.u32 %s39, 1
        %s544 = scalar_lea.sflag [#allocation13], %s543
        %s545 = sand.u32 %s141, 1
        %s546 = smul.addr %s545, 4
        %s547 = scalar_lea.vmem [#allocation12], %s546
        %p548 = pneg %p154
        %p549 = pneg %p151
        %p550 = pneg %p175
        %p551 = pneg %p172
        %p552 = pneg %p196
        %p553 = pneg %p193
        %p554 = pneg %p217
        %p555 = pneg %p214
        %p556 = pneg %p238
        %p557 = pneg %p235
        %p558 = pneg %p259
        %p559 = pneg %p256
        %p560 = pneg %p287
        %p561 = pneg %p284
        %s562 = sand.u32 %s274, 1
        %s563 = scalar_lea.sflag [#allocation8], %s562
        %s564 = sand.u32 %s274, 1
        %s565 = smul.addr %s564, 8
        %s566 = scalar_lea.vmem [#allocation20], %s565
        %p567 = pneg %p315
        %p568 = pneg %p312
        %s569 = sand.u32 %s302, 1
        %s570 = scalar_lea.sflag [#allocation22], %s569
        %s571 = sand.u32 %s302, 1
        %s572 = smul.addr %s571, 32
        %s573 = scalar_lea.vmem [#allocation21], %s572
        %p575 = scmp.eq.s32.totalorder %s44, 0
        // Predicated region
        $region89: #{tpu_custom_call.1} parent=55 // pred_check
          %p576 = pneg %p575
        $region90: #{tpu_custom_call.1} parent=55 // pred_check_branch
          %578 = sbr.rel (%p576) target = $region92
        $region91: #{tpu_custom_call.1} parent=55 // pred_region
          %v579 = vld [vmem:[%s483] sm:$0xff]
          %v580 = vpack.c.bf16 %v579, %v579
          %v581 = vld [vmem:[%s492] sm:$0xff]
          %v582 = vpack.c.bf16 %v581, %v581
          %v583 = vld [vmem:[#allocation15] sm:$0xf]
          %v584 = vld [vmem:[#allocation15 + $0x4] sm:$0xf]
          %v585 = vld [vmem:[#allocation15 + $0x8] sm:$0xf]
          %v586 = vld [vmem:[#allocation15 + $0xc] sm:$0xf]
          %v591 = vunpack.c.l.b16 %v583
          %v592 = vunpack.c.l.b16 %v584
          %v593 = vunpack.c.l.b16 %v585
          %v594 = vunpack.c.l.b16 %v586
          %v595 = vpack.c.b16 %v592, %v591
          %v596 = vpack.c.b16 %v594, %v593
          %vm599 = vcmask 261120
          %v601 = vsel %vm599, %v580, 0
          %603 = vmatprep.subr.bf16.mxu0 0
          %604 = vmatpush1.bf16.msra.mxu0 0
          %605 = vmatprep.subr.bf16.mxu0 0
          %606 = vmatpush1.bf16.msra.mxu0 0
          %607 = vmatprep.subr.bf16.mxu0 0
          %608 = vmatpush1.bf16.msra.mxu0 0
          %609 = vmatprep.subr.bf16.mxu0 0
          %610 = vmatpush1.bf16.msra.mxu0 0
          %611 = vmatprep.subr.bf16.mxu0 0
          %612 = vmatpush1.bf16.msra.mxu0 0
          %613 = vmatprep.subr.bf16.mxu0 0
          %614 = vmatpush1.bf16.msra.mxu0 0
          %615 = vmatprep.subr.bf16.mxu0 0
          %616 = vmatpush1.bf16.msra.mxu0 %v596
          %617 = vmatprep.subr.bf16.mxu0 0
          %618 = vmatpush1.bf16.msra.mxu0 %v595
          %619 = vmatprep.subr.bf16.mxu0 0
          %620 = vmatpush2.bf16.msra.mxu0 0
          %621 = vmatprep.subr.bf16.mxu0 0
          %622 = vmatpush2.bf16.msra.mxu0 0
          %623 = vmatprep.subr.bf16.mxu0 0
          %624 = vmatpush2.bf16.msra.mxu0 0
          %625 = vmatprep.subr.bf16.mxu0 0
          %626 = vmatpush2.bf16.msra.mxu0 0
          %627 = vmatprep.subr.bf16.mxu0 0
          %628 = vmatpush2.bf16.msra.mxu0 0
          %629 = vmatprep.subr.bf16.mxu0 0
          %630 = vmatpush2.bf16.msra.mxu0 0
          %631 = vmatprep.subr.bf16.mxu0 0
          %632 = vmatpush2.bf16.msra.mxu0 0
          %633 = vmatprep.subr.bf16.mxu0 0
          %634 = vmatpush2.bf16.msra.mxu0 0
          %635 = vmatprep.mubr.bf16.mxu0 0
          %636 = vmatmul.mubr.bf16.gmra.mxu0 %v601
          %v637 = vpop.f32.mrf.mxu0
          %v638 = vadd.f32 0.0, %v637
          %v639 = vpop.f32.mrf.mxu0
          %v640 = vpop.f32.mrf.mxu0
          %v641 = vpop.f32.mrf.mxu0
          %642 = vdwg.mxu0
          %v643 = vpack.c.bf16 %v638, %v638
          %vm644 = vcmask 257024
          %645 = vst.msk [vmem:[#allocation3] sm:$0xf] %vm644, %v643
          %v646 = vld [vmem:[#allocation17] sm:$0xf]
          %v647 = vld [vmem:[#allocation17 + $0x4] sm:$0xf]
          %v648 = vld [vmem:[#allocation17 + $0x8] sm:$0xf]
          %v649 = vld [vmem:[#allocation17 + $0xc] sm:$0xf]
          %v654 = vunpack.c.l.b16 %v646
          %v655 = vunpack.c.l.b16 %v647
          %v656 = vunpack.c.l.b16 %v648
          %v657 = vunpack.c.l.b16 %v649
          %v658 = vpack.c.b16 %v655, %v654
          %v659 = vpack.c.b16 %v657, %v656
          %v663 = vsel %vm599, %v582, 0
          %665 = vmatprep.subr.bf16.mxu0 0
          %666 = vmatpush1.bf16.msra.mxu0 0
          %667 = vmatprep.subr.bf16.mxu0 0
          %668 = vmatpush1.bf16.msra.mxu0 0
          %669 = vmatprep.subr.bf16.mxu0 0
          %670 = vmatpush1.bf16.msra.mxu0 0
          %671 = vmatprep.subr.bf16.mxu0 0
          %672 = vmatpush1.bf16.msra.mxu0 0
          %673 = vmatprep.subr.bf16.mxu0 0
          %674 = vmatpush1.bf16.msra.mxu0 0
          %675 = vmatprep.subr.bf16.mxu0 0
          %676 = vmatpush1.bf16.msra.mxu0 0
          %677 = vmatprep.subr.bf16.mxu0 0
          %678 = vmatpush1.bf16.msra.mxu0 %v659
          %679 = vmatprep.subr.bf16.mxu0 0
          %680 = vmatpush1.bf16.msra.mxu0 %v658
          %681 = vmatprep.subr.bf16.mxu0 0
          %682 = vmatpush2.bf16.msra.mxu0 0
          %683 = vmatprep.subr.bf16.mxu0 0
          %684 = vmatpush2.bf16.msra.mxu0 0
          %685 = vmatprep.subr.bf16.mxu0 0
          %686 = vmatpush2.bf16.msra.mxu0 0
          %687 = vmatprep.subr.bf16.mxu0 0
          %688 = vmatpush2.bf16.msra.mxu0 0
          %689 = vmatprep.subr.bf16.mxu0 0
          %690 = vmatpush2.bf16.msra.mxu0 0
          %691 = vmatprep.subr.bf16.mxu0 0
          %692 = vmatpush2.bf16.msra.mxu0 0
          %693 = vmatprep.subr.bf16.mxu0 0
          %694 = vmatpush2.bf16.msra.mxu0 0
          %695 = vmatprep.subr.bf16.mxu0 0
          %696 = vmatpush2.bf16.msra.mxu0 0
          %697 = vmatprep.mubr.bf16.mxu0 0
          %698 = vmatmul.mubr.bf16.gmra.mxu0 %v663
          %v699 = vpop.f32.mrf.mxu0
          %v700 = vadd.f32 0.0, %v699
          %v701 = vpop.f32.mrf.mxu0
          %v702 = vpop.f32.mrf.mxu0
          %v703 = vpop.f32.mrf.mxu0
          %704 = vdwg.mxu0
          %v705 = vpack.c.bf16 %v700, %v700
          %706 = vst.msk [vmem:[#allocation4] sm:$0xf] %vm644, %v705
        $region92: #{tpu_custom_call.1} parent=55 // pred_fallthru
          _
        %v707 = vld [vmem:[%s474] sm:$0xff]
        %v708 = vpack.c.bf16 %v707, %v707
        %v709 = vld [vmem:[#allocation14] sm:$0xf]
        %v710 = vld [vmem:[#allocation14 + $0x4] sm:$0xf]
        %v711 = vld [vmem:[#allocation14 + $0x8] sm:$0xf]
        %v712 = vld [vmem:[#allocation14 + $0xc] sm:$0xf]
        %v717 = vunpack.c.l.b16 %v709
        %v718 = vunpack.c.l.b16 %v710
        %v719 = vunpack.c.l.b16 %v711
        %v720 = vunpack.c.l.b16 %v712
        %v721 = vpack.c.b16 %v718, %v717
        %v722 = vpack.c.b16 %v720, %v719
        %vm725 = vcmask 261120
        %v727 = vsel %vm725, %v708, 0
        %729 = vmatprep.subr.bf16.mxu0 0
        %730 = vmatpush1.bf16.msra.mxu0 0
        %731 = vmatprep.subr.bf16.mxu0 0
        %732 = vmatpush1.bf16.msra.mxu0 0
        %733 = vmatprep.subr.bf16.mxu0 0
        %734 = vmatpush1.bf16.msra.mxu0 0
        %735 = vmatprep.subr.bf16.mxu0 0
        %736 = vmatpush1.bf16.msra.mxu0 0
        %737 = vmatprep.subr.bf16.mxu0 0
        %738 = vmatpush1.bf16.msra.mxu0 0
        %739 = vmatprep.subr.bf16.mxu0 0
        %740 = vmatpush1.bf16.msra.mxu0 0
        %741 = vmatprep.subr.bf16.mxu0 0
        %742 = vmatpush1.bf16.msra.mxu0 %v722
        %743 = vmatprep.subr.bf16.mxu0 0
        %744 = vmatpush1.bf16.msra.mxu0 %v721
        %745 = vmatprep.subr.bf16.mxu0 0
        %746 = vmatpush2.bf16.msra.mxu0 0
        %747 = vmatprep.subr.bf16.mxu0 0
        %748 = vmatpush2.bf16.msra.mxu0 0
        %749 = vmatprep.subr.bf16.mxu0 0
        %750 = vmatpush2.bf16.msra.mxu0 0
        %751 = vmatprep.subr.bf16.mxu0 0
        %752 = vmatpush2.bf16.msra.mxu0 0
        %753 = vmatprep.subr.bf16.mxu0 0
        %754 = vmatpush2.bf16.msra.mxu0 0
        %755 = vmatprep.subr.bf16.mxu0 0
        %756 = vmatpush2.bf16.msra.mxu0 0
        %757 = vmatprep.subr.bf16.mxu0 0
        %758 = vmatpush2.bf16.msra.mxu0 0
        %759 = vmatprep.subr.bf16.mxu0 0
        %760 = vmatpush2.bf16.msra.mxu0 0
        %761 = vmatprep.mubr.bf16.mxu0 0
        %762 = vmatmul.mubr.bf16.gmra.mxu0 %v727
        %v763 = vpop.f32.mrf.mxu0
        %v764 = vadd.f32 0.0, %v763
        %v765 = vpop.f32.mrf.mxu0
        %v766 = vpop.f32.mrf.mxu0
        %v767 = vpop.f32.mrf.mxu0
        %768 = vdwg.mxu0
        %v769 = vpack.c.bf16 %v764, %v764
        %vm770 = vcmask 257024
        %771 = vst.msk [vmem:[#allocation2] sm:$0xf] %vm770, %v769
        %v772 = vld [vmem:[%s501] sm:$0xf]
        %v773 = vunpack.c.l.bf16 %v772
        %v774 = vld [vmem:[#allocation2] sm:$0xf]
        %v775 = vld [vmem:[#allocation3] sm:$0xf]
        %v776 = vld [vmem:[#allocation4] sm:$0xf]
        %vm777 = vcmask 64512
        %v779 = vsel %vm777, %v774, 0
        %v782 = vsel %vm777, %v775, 0
        %784 = vmatprep.subr.bf16.mxu0 0
        %785 = vmatpush1.bf16.xpose.msra.mxu0 0
        %786 = vmatprep.subr.bf16.mxu0 0
        %787 = vmatpush1.bf16.xpose.msra.mxu0 0
        %788 = vmatprep.subr.bf16.mxu0 0
        %789 = vmatpush1.bf16.xpose.msra.mxu0 0
        %790 = vmatprep.subr.bf16.mxu0 0
        %791 = vmatpush1.bf16.xpose.msra.mxu0 0
        %792 = vmatprep.subr.bf16.mxu0 0
        %793 = vmatpush1.bf16.xpose.msra.mxu0 0
        %794 = vmatprep.subr.bf16.mxu0 0
        %795 = vmatpush1.bf16.xpose.msra.mxu0 0
        %796 = vmatprep.subr.bf16.mxu0 0
        %797 = vmatpush1.bf16.xpose.msra.mxu0 0
        %798 = vmatprep.subr.bf16.mxu0 0
        %799 = vmatpush1.bf16.xpose.msra.mxu0 %v782
        %800 = vmatprep.subr.bf16.mxu0 0
        %801 = vmatpush2.bf16.xpose.msra.mxu0 0
        %802 = vmatprep.subr.bf16.mxu0 0
        %803 = vmatpush2.bf16.xpose.msra.mxu0 0
        %804 = vmatprep.subr.bf16.mxu0 0
        %805 = vmatpush2.bf16.xpose.msra.mxu0 0
        %806 = vmatprep.subr.bf16.mxu0 0
        %807 = vmatpush2.bf16.xpose.msra.mxu0 0
        %808 = vmatprep.subr.bf16.mxu0 0
        %809 = vmatpush2.bf16.xpose.msra.mxu0 0
        %810 = vmatprep.subr.bf16.mxu0 0
        %811 = vmatpush2.bf16.xpose.msra.mxu0 0
        %812 = vmatprep.subr.bf16.mxu0 0
        %813 = vmatpush2.bf16.xpose.msra.mxu0 0
        %814 = vmatprep.subr.bf16.mxu0 0
        %815 = vmatpush2.bf16.xpose.msra.mxu0 0
        %816 = vmatprep.mubr.bf16.mxu0 0
        %817 = vmatmul.mubr.bf16.gmra.mxu0 %v779
        %v818 = vpop.f32.mrf.mxu0
        %v819 = vadd.f32 %v773, %v818
        %v820 = vpop.f32.mrf.mxu0
        %v821 = vpop.f32.mrf.mxu0
        %v822 = vpop.f32.mrf.mxu0
        %823 = vdwg.mxu0
        %v824 = vsel %vm777, %v819, -inf
        %825 = vmax.xlane.f32.xlu0 %v824
        %v826 = vpop.xlane.xlu0 %825
        %v827 = vsub.f32 %v819, %v826
        %v828 = vmul.f32 %v827, 1.442695
        %v829 = vpow.pop %v828
        %v830 = vsel %vm777, %v829, 0.0
        %831 = vadd.xlane.f32.xlu0 %v830
        %v832 = vpop.xlane.xlu0 %831
        %v833 = vrcp.pop %v832
        %v834 = vmul.f32 %v829, %v833
        %835 = vst.msk [vmem:[%s573] sm:$0xff] %vm777, %v834
        %v836 = vpack.c.bf16 %v834, %v834
        %v838 = vsel %vm777, %v836, 0
        %vm840 = vcmask 1043456
        %v842 = vsel %vm840, %v776, 0
        %844 = vmatprep.subr.bf16.mxu0 0
        %845 = vmatpush1.bf16.msra.mxu0 0
        %846 = vmatprep.subr.bf16.mxu0 0
        %847 = vmatpush1.bf16.msra.mxu0 0
        %848 = vmatprep.subr.bf16.mxu0 0
        %849 = vmatpush1.bf16.msra.mxu0 0
        %850 = vmatprep.subr.bf16.mxu0 0
        %851 = vmatpush1.bf16.msra.mxu0 0
        %852 = vmatprep.subr.bf16.mxu0 0
        %853 = vmatpush1.bf16.msra.mxu0 0
        %854 = vmatprep.subr.bf16.mxu0 0
        %855 = vmatpush1.bf16.msra.mxu0 0
        %856 = vmatprep.subr.bf16.mxu0 0
        %857 = vmatpush1.bf16.msra.mxu0 0
        %858 = vmatprep.subr.bf16.mxu0 0
        %859 = vmatpush1.bf16.msra.mxu0 %v842
        %860 = vmatprep.subr.bf16.mxu0 0
        %861 = vmatpush2.bf16.msra.mxu0 0
        %862 = vmatprep.subr.bf16.mxu0 0
        %863 = vmatpush2.bf16.msra.mxu0 0
        %864 = vmatprep.subr.bf16.mxu0 0
        %865 = vmatpush2.bf16.msra.mxu0 0
        %866 = vmatprep.subr.bf16.mxu0 0
        %867 = vmatpush2.bf16.msra.mxu0 0
        %868 = vmatprep.subr.bf16.mxu0 0
        %869 = vmatpush2.bf16.msra.mxu0 0
        %870 = vmatprep.subr.bf16.mxu0 0
        %871 = vmatpush2.bf16.msra.mxu0 0
        %872 = vmatprep.subr.bf16.mxu0 0
        %873 = vmatpush2.bf16.msra.mxu0 0
        %874 = vmatprep.subr.bf16.mxu0 0
        %875 = vmatpush2.bf16.msra.mxu0 0
        %876 = vmatprep.mubr.bf16.mxu0 0
        %877 = vmatmul.mubr.bf16.gmra.mxu0 %v838
        %v878 = vpop.f32.mrf.mxu0
        %v879 = vadd.f32 0.0, %v878
        %v880 = vpop.f32.mrf.mxu0
        %v881 = vpop.f32.mrf.mxu0
        %v882 = vpop.f32.mrf.mxu0
        %883 = vdwg.mxu0
        %v884 = vpack.c.bf16 %v879, %v879
        %vm885 = vcmask 60416
        %886 = vst.msk [vmem:[#allocation5] sm:$0xf] %vm885, %v884
        %v887 = vld [vmem:[#allocation2] sm:$0xf]
        %v888 = vld [vmem:[#allocation3] sm:$0xf]
        %v889 = vld [vmem:[#allocation4] sm:$0xf]
        %v891 = vunpack.c.l.b16 %v887
        %v892 = vpack.c.b16 %v891, %v891
        %893 = vrot.lane.b32.xlu0 %v892, 120
        %v894 = vpop.permute.xlu0 %893
        %v896 = vunpack.c.l.b16 %v888
        %v897 = vpack.c.b16 %v896, %v896
        %898 = vrot.lane.b32.xlu0 %v897, 120
        %v899 = vpop.permute.xlu0 %898
        %v901 = vsel %vm777, %v894, 0
        %v904 = vsel %vm777, %v899, 0
        %906 = vmatprep.subr.bf16.mxu0 0
        %907 = vmatpush1.bf16.xpose.msra.mxu0 0
        %908 = vmatprep.subr.bf16.mxu0 0
        %909 = vmatpush1.bf16.xpose.msra.mxu0 0
        %910 = vmatprep.subr.bf16.mxu0 0
        %911 = vmatpush1.bf16.xpose.msra.mxu0 0
        %912 = vmatprep.subr.bf16.mxu0 0
        %913 = vmatpush1.bf16.xpose.msra.mxu0 0
        %914 = vmatprep.subr.bf16.mxu0 0
        %915 = vmatpush1.bf16.xpose.msra.mxu0 0
        %916 = vmatprep.subr.bf16.mxu0 0
        %917 = vmatpush1.bf16.xpose.msra.mxu0 0
        %918 = vmatprep.subr.bf16.mxu0 0
        %919 = vmatpush1.bf16.xpose.msra.mxu0 0
        %920 = vmatprep.subr.bf16.mxu0 0
        %921 = vmatpush1.bf16.xpose.msra.mxu0 %v904
        %922 = vmatprep.subr.bf16.mxu0 0
        %923 = vmatpush2.bf16.xpose.msra.mxu0 0
        %924 = vmatprep.subr.bf16.mxu0 0
        %925 = vmatpush2.bf16.xpose.msra.mxu0 0
        %926 = vmatprep.subr.bf16.mxu0 0
        %927 = vmatpush2.bf16.xpose.msra.mxu0 0
        %928 = vmatprep.subr.bf16.mxu0 0
        %929 = vmatpush2.bf16.xpose.msra.mxu0 0
        %930 = vmatprep.subr.bf16.mxu0 0
        %931 = vmatpush2.bf16.xpose.msra.mxu0 0
        %932 = vmatprep.subr.bf16.mxu0 0
        %933 = vmatpush2.bf16.xpose.msra.mxu0 0
        %934 = vmatprep.subr.bf16.mxu0 0
        %935 = vmatpush2.bf16.xpose.msra.mxu0 0
        %936 = vmatprep.subr.bf16.mxu0 0
        %937 = vmatpush2.bf16.xpose.msra.mxu0 0
        %938 = vmatprep.mubr.bf16.mxu0 0
        %939 = vmatmul.mubr.bf16.gmra.mxu0 %v901
        %v940 = vpop.f32.mrf.mxu0
        %v941 = vadd.f32 %v773, %v940
        %v942 = vpop.f32.mrf.mxu0
        %v943 = vpop.f32.mrf.mxu0
        %v944 = vpop.f32.mrf.mxu0
        %945 = vdwg.mxu0
        %v946 = vsel %vm777, %v941, -inf
        %947 = vmax.xlane.f32.xlu0 %v946
        %v948 = vpop.xlane.xlu0 %947
        %v949 = vsub.f32 %v941, %v948
        %v950 = vmul.f32 %v949, 1.442695
        %v951 = vpow.pop %v950
        %v952 = vsel %vm777, %v951, 0.0
        %953 = vadd.xlane.f32.xlu0 %v952
        %v954 = vpop.xlane.xlu0 %953
        %v955 = vrcp.pop %v954
        %v956 = vmul.f32 %v951, %v955
        %s957 = scalar_lea.vmem %s573, 8 [#allocation21]
        %958 = vst.msk [vmem:[%s957] sm:$0xff] %vm777, %v956
        %v959 = vpack.c.bf16 %v956, %v956
        %v961 = vunpack.c.l.b16 %v889
        %v962 = vpack.c.b16 %v961, %v961
        %963 = vrot.lane.b32.xlu0 %v962, 120
        %v964 = vpop.permute.xlu0 %963
        %v966 = vsel %vm777, %v959, 0
        %v969 = vsel %vm840, %v964, 0
        %971 = vmatprep.subr.bf16.mxu0 0
        %972 = vmatpush1.bf16.msra.mxu0 0
        %973 = vmatprep.subr.bf16.mxu0 0
        %974 = vmatpush1.bf16.msra.mxu0 0
        %975 = vmatprep.subr.bf16.mxu0 0
        %976 = vmatpush1.bf16.msra.mxu0 0
        %977 = vmatprep.subr.bf16.mxu0 0
        %978 = vmatpush1.bf16.msra.mxu0 0
        %979 = vmatprep.subr.bf16.mxu0 0
        %980 = vmatpush1.bf16.msra.mxu0 0
        %981 = vmatprep.subr.bf16.mxu0 0
        %982 = vmatpush1.bf16.msra.mxu0 0
        %983 = vmatprep.subr.bf16.mxu0 0
        %984 = vmatpush1.bf16.msra.mxu0 0
        %985 = vmatprep.subr.bf16.mxu0 0
        %986 = vmatpush1.bf16.msra.mxu0 %v969
        %987 = vmatprep.subr.bf16.mxu0 0
        %988 = vmatpush2.bf16.msra.mxu0 0
        %989 = vmatprep.subr.bf16.mxu0 0
        %990 = vmatpush2.bf16.msra.mxu0 0
        %991 = vmatprep.subr.bf16.mxu0 0
        %992 = vmatpush2.bf16.msra.mxu0 0
        %993 = vmatprep.subr.bf16.mxu0 0
        %994 = vmatpush2.bf16.msra.mxu0 0
        %995 = vmatprep.subr.bf16.mxu0 0
        %996 = vmatpush2.bf16.msra.mxu0 0
        %997 = vmatprep.subr.bf16.mxu0 0
        %998 = vmatpush2.bf16.msra.mxu0 0
        %999 = vmatprep.subr.bf16.mxu0 0
        %1000 = vmatpush2.bf16.msra.mxu0 0
        %1001 = vmatprep.subr.bf16.mxu0 0
        %1002 = vmatpush2.bf16.msra.mxu0 0
        %1003 = vmatprep.mubr.bf16.mxu0 0
        %1004 = vmatmul.mubr.bf16.gmra.mxu0 %v966
        %v1005 = vpop.f32.mrf.mxu0
        %v1006 = vadd.f32 0.0, %v1005
        %v1007 = vpop.f32.mrf.mxu0
        %v1008 = vpop.f32.mrf.mxu0
        %v1009 = vpop.f32.mrf.mxu0
        %1010 = vdwg.mxu0
        %v1011 = vpack.c.bf16 %v1006, %v1006
        %v1013 = vunpack.c.l.b16 %v1011
        %v1014 = vpack.c.b16 %v1013, %v1013
        %1015 = vrot.lane.b32.xlu0 %v1014, 8
        %v1016 = vpop.permute.xlu0 %1015
        %vm1018 = vcmask 126016
        %1019 = vst.msk [vmem:[#allocation5] sm:$0xf] %vm1018, %v1016
        %v1020 = vld [vmem:[#allocation2] sm:$0xf]
        %v1021 = vld [vmem:[#allocation3] sm:$0xf]
        %v1022 = vld [vmem:[#allocation4] sm:$0xf]
        %v1024 = vunpack.c.l.b16 %v1020
        %v1025 = vpack.c.b16 %v1024, %v1024
        %1026 = vrot.lane.b32.xlu0 %v1025, 112
        %v1027 = vpop.permute.xlu0 %1026
        %v1029 = vunpack.c.l.b16 %v1021
        %v1030 = vpack.c.b16 %v1029, %v1029
        %1031 = vrot.lane.b32.xlu0 %v1030, 112
        %v1032 = vpop.permute.xlu0 %1031
        %v1034 = vsel %vm777, %v1027, 0
        %v1037 = vsel %vm777, %v1032, 0
        %1039 = vmatprep.subr.bf16.mxu0 0
        %1040 = vmatpush1.bf16.xpose.msra.mxu0 0
        %1041 = vmatprep.subr.bf16.mxu0 0
        %1042 = vmatpush1.bf16.xpose.msra.mxu0 0
        %1043 = vmatprep.subr.bf16.mxu0 0
        %1044 = vmatpush1.bf16.xpose.msra.mxu0 0
        %1045 = vmatprep.subr.bf16.mxu0 0
        %1046 = vmatpush1.bf16.xpose.msra.mxu0 0
        %1047 = vmatprep.subr.bf16.mxu0 0
        %1048 = vmatpush1.bf16.xpose.msra.mxu0 0
        %1049 = vmatprep.subr.bf16.mxu0 0
        %1050 = vmatpush1.bf16.xpose.msra.mxu0 0
        %1051 = vmatprep.subr.bf16.mxu0 0
        %1052 = vmatpush1.bf16.xpose.msra.mxu0 0
        %1053 = vmatprep.subr.bf16.mxu0 0
        %1054 = vmatpush1.bf16.xpose.msra.mxu0 %v1037
        %1055 = vmatprep.subr.bf16.mxu0 0
        %1056 = vmatpush2.bf16.xpose.msra.mxu0 0
        %1057 = vmatprep.subr.bf16.mxu0 0
        %1058 = vmatpush2.bf16.xpose.msra.mxu0 0
        %1059 = vmatprep.subr.bf16.mxu0 0
        %1060 = vmatpush2.bf16.xpose.msra.mxu0 0
        %1061 = vmatprep.subr.bf16.mxu0 0
        %1062 = vmatpush2.bf16.xpose.msra.mxu0 0
        %1063 = vmatprep.subr.bf16.mxu0 0
        %1064 = vmatpush2.bf16.xpose.msra.mxu0 0
        %1065 = vmatprep.subr.bf16.mxu0 0
        %1066 = vmatpush2.bf16.xpose.msra.mxu0 0
        %1067 = vmatprep.subr.bf16.mxu0 0
        %1068 = vmatpush2.bf16.xpose.msra.mxu0 0
        %1069 = vmatprep.subr.bf16.mxu0 0
        %1070 = vmatpush2.bf16.xpose.msra.mxu0 0
        %1071 = vmatprep.mubr.bf16.mxu0 0
        %1072 = vmatmul.mubr.bf16.gmra.mxu0 %v1034
        %v1073 = vpop.f32.mrf.mxu0
        %v1074 = vadd.f32 %v773, %v1073
        %v1075 = vpop.f32.mrf.mxu0
        %v1076 = vpop.f32.mrf.mxu0
        %v1077 = vpop.f32.mrf.mxu0
        %1078 = vdwg.mxu0
        %v1079 = vsel %vm777, %v1074, -inf
        %1080 = vmax.xlane.f32.xlu0 %v1079
        %v1081 = vpop.xlane.xlu0 %1080
        %v1082 = vsub.f32 %v1074, %v1081
        %v1083 = vmul.f32 %v1082, 1.442695
        %v1084 = vpow.pop %v1083
        %v1085 = vsel %vm777, %v1084, 0.0
        %1086 = vadd.xlane.f32.xlu0 %v1085
        %v1087 = vpop.xlane.xlu0 %1086
        %v1088 = vrcp.pop %v1087
        %v1089 = vmul.f32 %v1084, %v1088
        %s1090 = scalar_lea.vmem %s573, 16 [#allocation21]
        %1091 = vst.msk [vmem:[%s1090] sm:$0xff] %vm777, %v1089
        %v1092 = vpack.c.bf16 %v1089, %v1089
        %v1094 = vunpack.c.l.b16 %v1022
        %v1095 = vpack.c.b16 %v1094, %v1094
        %1096 = vrot.lane.b32.xlu0 %v1095, 112
        %v1097 = vpop.permute.xlu0 %1096
        %v1099 = vsel %vm777, %v1092, 0
        %v1102 = vsel %vm840, %v1097, 0
        %1104 = vmatprep.subr.bf16.mxu0 0
        %1105 = vmatpush1.bf16.msra.mxu0 0
        %1106 = vmatprep.subr.bf16.mxu0 0
        %1107 = vmatpush1.bf16.msra.mxu0 0
        %1108 = vmatprep.subr.bf16.mxu0 0
        %1109 = vmatpush1.bf16.msra.mxu0 0
        %1110 = vmatprep.subr.bf16.mxu0 0
        %1111 = vmatpush1.bf16.msra.mxu0 0
        %1112 = vmatprep.subr.bf16.mxu0 0
        %1113 = vmatpush1.bf16.msra.mxu0 0
        %1114 = vmatprep.subr.bf16.mxu0 0
        %1115 = vmatpush1.bf16.msra.mxu0 0
        %1116 = vmatprep.subr.bf16.mxu0 0
        %1117 = vmatpush1.bf16.msra.mxu0 0
        %1118 = vmatprep.subr.bf16.mxu0 0
        %1119 = vmatpush1.bf16.msra.mxu0 %v1102
        %1120 = vmatprep.subr.bf16.mxu0 0
        %1121 = vmatpush2.bf16.msra.mxu0 0
        %1122 = vmatprep.subr.bf16.mxu0 0
        %1123 = vmatpush2.bf16.msra.mxu0 0
        %1124 = vmatprep.subr.bf16.mxu0 0
        %1125 = vmatpush2.bf16.msra.mxu0 0
        %1126 = vmatprep.subr.bf16.mxu0 0
        %1127 = vmatpush2.bf16.msra.mxu0 0
        %1128 = vmatprep.subr.bf16.mxu0 0
        %1129 = vmatpush2.bf16.msra.mxu0 0
        %1130 = vmatprep.subr.bf16.mxu0 0
        %1131 = vmatpush2.bf16.msra.mxu0 0
        %1132 = vmatprep.subr.bf16.mxu0 0
        %1133 = vmatpush2.bf16.msra.mxu0 0
        %1134 = vmatprep.subr.bf16.mxu0 0
        %1135 = vmatpush2.bf16.msra.mxu0 0
        %1136 = vmatprep.mubr.bf16.mxu0 0
        %1137 = vmatmul.mubr.bf16.gmra.mxu0 %v1099
        %v1138 = vpop.f32.mrf.mxu0
        %v1139 = vadd.f32 0.0, %v1138
        %v1140 = vpop.f32.mrf.mxu0
        %v1141 = vpop.f32.mrf.mxu0
        %v1142 = vpop.f32.mrf.mxu0
        %1143 = vdwg.mxu0
        %v1144 = vpack.c.bf16 %v1139, %v1139
        %v1146 = vunpack.c.l.b16 %v1144
        %v1147 = vpack.c.b16 %v1146, %v1146
        %1148 = vrot.lane.b32.xlu0 %v1147, 16
        %v1149 = vpop.permute.xlu0 %1148
        %vm1151 = vcmask 191616
        %1152 = vst.msk [vmem:[#allocation5] sm:$0xf] %vm1151, %v1149
        %v1153 = vld [vmem:[#allocation2] sm:$0xf]
        %v1154 = vld [vmem:[#allocation3] sm:$0xf]
        %v1155 = vld [vmem:[#allocation4] sm:$0xf]
        %v1157 = vunpack.c.l.b16 %v1153
        %v1158 = vpack.c.b16 %v1157, %v1157
        %1159 = vrot.lane.b32.xlu0 %v1158, 104
        %v1160 = vpop.permute.xlu0 %1159
        %v1162 = vunpack.c.l.b16 %v1154
        %v1163 = vpack.c.b16 %v1162, %v1162
        %1164 = vrot.lane.b32.xlu0 %v1163, 104
        %v1165 = vpop.permute.xlu0 %1164
        %v1167 = vsel %vm777, %v1160, 0
        %v1170 = vsel %vm777, %v1165, 0
        %1172 = vmatprep.subr.bf16.mxu0 0
        %1173 = vmatpush1.bf16.xpose.msra.mxu0 0
        %1174 = vmatprep.subr.bf16.mxu0 0
        %1175 = vmatpush1.bf16.xpose.msra.mxu0 0
        %1176 = vmatprep.subr.bf16.mxu0 0
        %1177 = vmatpush1.bf16.xpose.msra.mxu0 0
        %1178 = vmatprep.subr.bf16.mxu0 0
        %1179 = vmatpush1.bf16.xpose.msra.mxu0 0
        %1180 = vmatprep.subr.bf16.mxu0 0
        %1181 = vmatpush1.bf16.xpose.msra.mxu0 0
        %1182 = vmatprep.subr.bf16.mxu0 0
        %1183 = vmatpush1.bf16.xpose.msra.mxu0 0
        %1184 = vmatprep.subr.bf16.mxu0 0
        %1185 = vmatpush1.bf16.xpose.msra.mxu0 0
        %1186 = vmatprep.subr.bf16.mxu0 0
        %1187 = vmatpush1.bf16.xpose.msra.mxu0 %v1170
        %1188 = vmatprep.subr.bf16.mxu0 0
        %1189 = vmatpush2.bf16.xpose.msra.mxu0 0
        %1190 = vmatprep.subr.bf16.mxu0 0
        %1191 = vmatpush2.bf16.xpose.msra.mxu0 0
        %1192 = vmatprep.subr.bf16.mxu0 0
        %1193 = vmatpush2.bf16.xpose.msra.mxu0 0
        %1194 = vmatprep.subr.bf16.mxu0 0
        %1195 = vmatpush2.bf16.xpose.msra.mxu0 0
        %1196 = vmatprep.subr.bf16.mxu0 0
        %1197 = vmatpush2.bf16.xpose.msra.mxu0 0
        %1198 = vmatprep.subr.bf16.mxu0 0
        %1199 = vmatpush2.bf16.xpose.msra.mxu0 0
        %1200 = vmatprep.subr.bf16.mxu0 0
        %1201 = vmatpush2.bf16.xpose.msra.mxu0 0
        %1202 = vmatprep.subr.bf16.mxu0 0
        %1203 = vmatpush2.bf16.xpose.msra.mxu0 0
        %1204 = vmatprep.mubr.bf16.mxu0 0
        %1205 = vmatmul.mubr.bf16.gmra.mxu0 %v1167
        %v1206 = vpop.f32.mrf.mxu0
        %v1207 = vadd.f32 %v773, %v1206
        %v1208 = vpop.f32.mrf.mxu0
        %v1209 = vpop.f32.mrf.mxu0
        %v1210 = vpop.f32.mrf.mxu0
        %1211 = vdwg.mxu0
        %v1212 = vsel %vm777, %v1207, -inf
        %1213 = vmax.xlane.f32.xlu0 %v1212
        %v1214 = vpop.xlane.xlu0 %1213
        %v1215 = vsub.f32 %v1207, %v1214
        %v1216 = vmul.f32 %v1215, 1.442695
        %v1217 = vpow.pop %v1216
        %v1218 = vsel %vm777, %v1217, 0.0
        %1219 = vadd.xlane.f32.xlu0 %v1218
        %v1220 = vpop.xlane.xlu0 %1219
        %v1221 = vrcp.pop %v1220
        %v1222 = vmul.f32 %v1217, %v1221
        %s1223 = scalar_lea.vmem %s573, 24 [#allocation21]
        %1224 = vst.msk [vmem:[%s1223] sm:$0xff] %vm777, %v1222
        %v1225 = vpack.c.bf16 %v1222, %v1222
        %v1227 = vunpack.c.l.b16 %v1155
        %v1228 = vpack.c.b16 %v1227, %v1227
        %1229 = vrot.lane.b32.xlu0 %v1228, 104
        %v1230 = vpop.permute.xlu0 %1229
        %v1232 = vsel %vm777, %v1225, 0
        %v1235 = vsel %vm840, %v1230, 0
        %1237 = vmatprep.subr.bf16.mxu0 0
        %1238 = vmatpush1.bf16.msra.mxu0 0
        %1239 = vmatprep.subr.bf16.mxu0 0
        %1240 = vmatpush1.bf16.msra.mxu0 0
        %1241 = vmatprep.subr.bf16.mxu0 0
        %1242 = vmatpush1.bf16.msra.mxu0 0
        %1243 = vmatprep.subr.bf16.mxu0 0
        %1244 = vmatpush1.bf16.msra.mxu0 0
        %1245 = vmatprep.subr.bf16.mxu0 0
        %1246 = vmatpush1.bf16.msra.mxu0 0
        %1247 = vmatprep.subr.bf16.mxu0 0
        %1248 = vmatpush1.bf16.msra.mxu0 0
        %1249 = vmatprep.subr.bf16.mxu0 0
        %1250 = vmatpush1.bf16.msra.mxu0 0
        %1251 = vmatprep.subr.bf16.mxu0 0
        %1252 = vmatpush1.bf16.msra.mxu0 %v1235
        %1253 = vmatprep.subr.bf16.mxu0 0
        %1254 = vmatpush2.bf16.msra.mxu0 0
        %1255 = vmatprep.subr.bf16.mxu0 0
        %1256 = vmatpush2.bf16.msra.mxu0 0
        %1257 = vmatprep.subr.bf16.mxu0 0
        %1258 = vmatpush2.bf16.msra.mxu0 0
        %1259 = vmatprep.subr.bf16.mxu0 0
        %1260 = vmatpush2.bf16.msra.mxu0 0
        %1261 = vmatprep.subr.bf16.mxu0 0
        %1262 = vmatpush2.bf16.msra.mxu0 0
        %1263 = vmatprep.subr.bf16.mxu0 0
        %1264 = vmatpush2.bf16.msra.mxu0 0
        %1265 = vmatprep.subr.bf16.mxu0 0
        %1266 = vmatpush2.bf16.msra.mxu0 0
        %1267 = vmatprep.subr.bf16.mxu0 0
        %1268 = vmatpush2.bf16.msra.mxu0 0
        %1269 = vmatprep.mubr.bf16.mxu0 0
        %1270 = vmatmul.mubr.bf16.gmra.mxu0 %v1232
        %v1271 = vpop.f32.mrf.mxu0
        %v1272 = vadd.f32 0.0, %v1271
        %v1273 = vpop.f32.mrf.mxu0
        %v1274 = vpop.f32.mrf.mxu0
        %v1275 = vpop.f32.mrf.mxu0
        %1276 = vdwg.mxu0
        %v1277 = vpack.c.bf16 %v1272, %v1272
        %v1279 = vunpack.c.l.b16 %v1277
        %v1280 = vpack.c.b16 %v1279, %v1279
        %1281 = vrot.lane.b32.xlu0 %v1280, 24
        %v1282 = vpop.permute.xlu0 %1281
        %vm1284 = vcmask 257216
        %1285 = vst.msk [vmem:[#allocation5] sm:$0xf] %vm1284, %v1282
        %v1286 = vld [vmem:[#allocation5] sm:$0xf]
        %v1287 = vld [vmem:[#allocation18] sm:$0xf]
        %v1288 = vld [vmem:[#allocation18 + $0x4] sm:$0xf]
        %v1289 = vld [vmem:[#allocation18 + $0x8] sm:$0xf]
        %v1290 = vld [vmem:[#allocation18 + $0xc] sm:$0xf]
        %v1291 = vld [vmem:[%s8] sm:$0x1]
        %v1293 = vlaneseq
        %v1294 = vshrl.u32 %v1293, 7
        %v1295 = vsub.s32 0, %v1294
        %v1296 = vrot.slane %v1291, %v1295
        %v1302 = vunpack.c.l.b16 %v1287
        %v1303 = vunpack.c.l.b16 %v1288
        %v1304 = vunpack.c.l.b16 %v1289
        %v1305 = vunpack.c.l.b16 %v1290
        %v1306 = vpack.c.b16 %v1303, %v1302
        %v1307 = vpack.c.b16 %v1305, %v1304
        %v1311 = vsel %vm725, %v1286, 0
        %1313 = vmatprep.subr.bf16.mxu0 0
        %1314 = vmatpush1.bf16.msra.mxu0 0
        %1315 = vmatprep.subr.bf16.mxu0 0
        %1316 = vmatpush1.bf16.msra.mxu0 0
        %1317 = vmatprep.subr.bf16.mxu0 0
        %1318 = vmatpush1.bf16.msra.mxu0 0
        %1319 = vmatprep.subr.bf16.mxu0 0
        %1320 = vmatpush1.bf16.msra.mxu0 0
        %1321 = vmatprep.subr.bf16.mxu0 0
        %1322 = vmatpush1.bf16.msra.mxu0 0
        %1323 = vmatprep.subr.bf16.mxu0 0
        %1324 = vmatpush1.bf16.msra.mxu0 0
        %1325 = vmatprep.subr.bf16.mxu0 0
        %1326 = vmatpush1.bf16.msra.mxu0 %v1307
        %1327 = vmatprep.subr.bf16.mxu0 0
        %1328 = vmatpush1.bf16.msra.mxu0 %v1306
        %1329 = vmatprep.subr.bf16.mxu0 0
        %1330 = vmatpush2.bf16.msra.mxu0 0
        %1331 = vmatprep.subr.bf16.mxu0 0
        %1332 = vmatpush2.bf16.msra.mxu0 0
        %1333 = vmatprep.subr.bf16.mxu0 0
        %1334 = vmatpush2.bf16.msra.mxu0 0
        %1335 = vmatprep.subr.bf16.mxu0 0
        %1336 = vmatpush2.bf16.msra.mxu0 0
        %1337 = vmatprep.subr.bf16.mxu0 0
        %1338 = vmatpush2.bf16.msra.mxu0 0
        %1339 = vmatprep.subr.bf16.mxu0 0
        %1340 = vmatpush2.bf16.msra.mxu0 0
        %1341 = vmatprep.subr.bf16.mxu0 0
        %1342 = vmatpush2.bf16.msra.mxu0 0
        %1343 = vmatprep.subr.bf16.mxu0 0
        %1344 = vmatpush2.bf16.msra.mxu0 0
        %1345 = vmatprep.mubr.bf16.mxu0 0
        %1346 = vmatmul.mubr.bf16.gmra.mxu0 %v1311
        %v1347 = vpop.f32.mrf.mxu0
        %v1348 = vadd.f32 %v1296, %v1347
        %v1349 = vpop.f32.mrf.mxu0
        %v1350 = vpop.f32.mrf.mxu0
        %v1351 = vpop.f32.mrf.mxu0
        %1352 = vdwg.mxu0
        %1353 = vst.msk [vmem:[%s566] sm:$0xff] %vm725, %v1348
        %s1354 = sand.u32 %s274, 1
        %s1355 = scalar_lea.sflag [#allocation8], %s1354
        %s1356 = sand.u32 %s274, 1
        %s1357 = smul.addr %s1356, 8
        %s1358 = scalar_lea.vmem [#allocation20], %s1357
        %s1359 = sand.u32 %s302, 1
        %s1360 = scalar_lea.sflag [#allocation22], %s1359
        %s1361 = sand.u32 %s302, 1
        %s1362 = smul.addr %s1361, 32
        %s1363 = scalar_lea.vmem [#allocation21], %s1362
        // Predicated region
        $region93: #{tpu_custom_call.1} parent=55 // pred_check
          %p1364 = pneg %p284
        $region94: #{tpu_custom_call.1} parent=55 // pred_check_branch
          %1366 = sbr.rel (%p1364) target = $region96
        $region95: #{tpu_custom_call.1} parent=55 // pred_region
          %s1368 = ssub.s32 128, 128
          %1369 = vsyncadd %s1355, %s1368
          %s1370 = sadd.s32 %s44, %s43
          %s1371 = smul.addr %s1370, 128
          %s1372 = scalar_lea.hbm %s9, %s1371
          %s1374 = sshll.u32 %s1358, 4
          %s1375 = int_to_ptr.vmem [resolvable:$true] %s1374
          %1377 = dma.vmem_to_hbm [thread:$0]  %s1375, 128, %s1372, %s1355
        $region96: #{tpu_custom_call.1} parent=55 // pred_fallthru
          _
        // Predicated region
        $region97: #{tpu_custom_call.1} parent=55 // pred_check
          %p1378 = pneg %p312
        $region98: #{tpu_custom_call.1} parent=55 // pred_check_branch
          %1380 = sbr.rel (%p1378) target = $region100
        $region99: #{tpu_custom_call.1} parent=55 // pred_region
          %s1382 = ssub.s32 512, 512
          %1383 = vsyncadd %s1360, %s1382
          %s1384 = smul.addr %s43, 4
          %s1385 = sadd.s32 %s44, %s1384
          %s1386 = smul.addr %s1385, 128
          %s1387 = scalar_lea.hbm %s10, %s1386
          %s1388 = sshll.u32 %s1363, 4
          %s1389 = int_to_ptr.vmem [resolvable:$true] %s1388
          %1394 = dma.vmem_to_hbm [thread:$0]  %s1389, 512, %s1387, %s1360, 128, 128, 8
        $region100: #{tpu_custom_call.1} parent=55 // pred_fallthru
          _
      $region56: #{tpu_custom_call.1} parent=5 // pred_fallthru
        _
      %p1395 = scmp.le.s32.totalorder 2, %s34
      // Predicated region
      $region101: #{tpu_custom_call.1} parent=5 // pred_check
        %p1396 = pneg %p1395
      $region102: #{tpu_custom_call.1} parent=5 // pred_check_branch
        %1398 = sbr.rel (%p1396) target = $region104
      $region103: #{tpu_custom_call.1} parent=5 // pred_region
        %s1399 = ssub.s32 %s34, 2
        // Predicated region
        $region105: #{tpu_custom_call.1} parent=103 // pred_check
          %p1400 = pneg %p290
        $region106: #{tpu_custom_call.1} parent=103 // pred_check_branch
          %1402 = sbr.rel (%p1400) target = $region108
        $region107: #{tpu_custom_call.1} parent=103 // pred_region
          %s1403 = sand.u32 %s275, 1
          %s1404 = scalar_lea.sflag [#allocation8], %s1403
          %s1405 = sand.u32 %s275, 1
          %s1406 = smul.addr %s1405, 8
          %s1407 = scalar_lea.vmem [#allocation20], %s1406
          %1408 = dma.done %s1404, 128
        $region108: #{tpu_custom_call.1} parent=103 // pred_fallthru
          _
        // Predicated region
        $region109: #{tpu_custom_call.1} parent=103 // pred_check
          %p1409 = pneg %p318
        $region110: #{tpu_custom_call.1} parent=103 // pred_check_branch
          %1411 = sbr.rel (%p1409) target = $region112
        $region111: #{tpu_custom_call.1} parent=103 // pred_region
          %s1412 = sand.u32 %s303, 1
          %s1413 = scalar_lea.sflag [#allocation22], %s1412
          %s1414 = sand.u32 %s303, 1
          %s1415 = smul.addr %s1414, 32
          %s1416 = scalar_lea.vmem [#allocation21], %s1415
          %1417 = dma.done %s1413, 512
        $region112: #{tpu_custom_call.1} parent=103 // pred_fallthru
          _
      $region104: #{tpu_custom_call.1} parent=5 // pred_fallthru
        _
    $region6: #{tpu_custom_call.1} parent=1 // loop_footer
      %s38 = sadd.s32 1, %s34
    $region7: #{tpu_custom_call.1} parent=1 // loop_footer_branch
      %33 = sbr.rel target = $region3
    $region8: #{tpu_custom_call.1} parent=1 // loop_exit
      _
    %1418 = vsyncpa [#allocation7], 1
    %s1419 = scalar_lea.sflag [#allocation7], 1
    %1420 = vsyncpa %s1419, 1
    %1421 = vsyncpa [#allocation10], 1
    %s1422 = scalar_lea.sflag [#allocation10], 1
    %1423 = vsyncpa %s1422, 1
    %1424 = vsyncpa [#allocation13], 1
    %s1425 = scalar_lea.sflag [#allocation13], 1
    %1426 = vsyncpa %s1425, 1
    %1427 = vsyncpa [#allocation16], 1
    %1428 = vsyncpa [#allocation19], 1
    %1429 = vsyncpa [#allocation8], 1
    %s1430 = scalar_lea.sflag [#allocation8], 1
    %1431 = vsyncpa %s1430, 1
    %1432 = vsyncpa [#allocation22], 1
    %s1433 = scalar_lea.sflag [#allocation22], 1
    %1434 = vsyncpa %s1433, 1

</llo_original>
